<compile_context>
chip_gen: v7x
topology: tpu7x:2x2x1
jax: 0.10.0
libtpu: 0.0.40
codegen_flags: <defaults>
</compile_context>

<pallas_src>
import functools

import jax
import jax.numpy as jnp
from jax.experimental import pallas as pl
from jax.experimental.pallas import tpu as pltpu


def _fused_layers_kernel(x0_ref, pad_ref, gamma_ref, beta_ref, wqkv_ref, wo_ref,
                         wff1_ref, wff2_ref, o_ref, *, heads, dim_head, ff_dim,
                         eps=1e-5):
    """One (batch element, layer) step.  The activation lives in o_ref across layers."""
    l = pl.program_id(1)

    # Layer 0: load the embedded tokens into the resident activation buffer.
    @pl.when(l == 0)
    def _():
        o_ref[...] = x0_ref[...]

    x = o_ref[0]                     # (N, D) resident activations for this batch element
    pad = pad_ref[0]                 # (1, N)  1.0 where attention_mask == 1
    gamma = gamma_ref[0]             # (1, D)
    beta = beta_ref[0]               # (1, D)
    wqkv = wqkv_ref[0]               # (D, 3*H*Dh)  (1/sqrt(Dh) pre-folded into Q columns)
    wo = wo_ref[0]                   # (H*Dh, D)
    wff1 = wff1_ref[0]               # (D, 2*F)     [x_half | gate_half]
    wff2 = wff2_ref[0]               # (F, D)

    H, Dh, F = heads, dim_head, ff_dim
    HD = H * Dh

    def layer_norm(v):               # torch.nn.LayerNorm(dim), eps=1e-5
        mu = jnp.mean(v, axis=-1, keepdims=True)
        var = jnp.mean(jnp.square(v - mu), axis=-1, keepdims=True)
        return (v - mu) * jax.lax.rsqrt(var + eps) * gamma + beta

    # Mask *padded* key positions (attention_mask == 0).  Bounded constant instead of
    # -finfo.max so row-max subtraction never manufactures -inf.
    key_pad = pad <= 0.5             # (1, N) bool, broadcasts over query rows
    neg_big = jnp.float32(-1e30)

    # --- batch = self.norm(batch); batch = attn(batch, key_padding_mask) + batch ---
    h = layer_norm(x)                                                  # (N, D)
    qkv = jnp.dot(h, wqkv, preferred_element_type=jnp.float32)         # (N, 3*H*Dh)

    head_outs = []
    for hd in range(H):              # H is tiny & static; projections already fused above
        q = qkv[:, hd * Dh:(hd + 1) * Dh]                              # (N, Dh) (pre-scaled)
        k = qkv[:, HD + hd * Dh: HD + (hd + 1) * Dh]
        v = qkv[:, 2 * HD + hd * Dh: 2 * HD + (hd + 1) * Dh]
        sim = jax.lax.dot_general(q, k, (((1,), (1,)), ((), ())),
                                  preferred_element_type=jnp.float32)  # (N, N)
        sim = jnp.where(key_pad, neg_big, sim)
        sim = sim - jnp.max(sim, axis=-1, keepdims=True)
        p = jnp.exp(sim)
        attn = p / jnp.sum(p, axis=-1, keepdims=True)
        head_outs.append(jnp.dot(attn, v, preferred_element_type=jnp.float32))  # (N, Dh)

    attn_cat = jnp.concatenate(head_outs, axis=-1)                     # (N, H*Dh)
    attn_out = jnp.dot(attn_cat, wo, preferred_element_type=jnp.float32)  # (N, D)
    h2 = attn_out + h                # residual onto the *normed* input (as in torch code)

    # --- batch = self.norm(batch); batch = ff(batch) + batch  (same shared LayerNorm) ---
    h3 = layer_norm(h2)
    ff1 = jnp.dot(h3, wff1, preferred_element_type=jnp.float32)        # (N, 2F)
    xp = ff1[:, :F]
    gate = ff1[:, F:]
    # exact (erf) GELU, matching torch F.gelu default
    gelu_gate = 0.5 * gate * (1.0 + jax.lax.erf(gate * 0.7071067811865476))
    ff = jnp.dot(gelu_gate * xp, wff2, preferred_element_type=jnp.float32)  # (N, D)

    o_ref[0] = ff + h3               # resident; DMA'd to HBM only when the batch index moves


def fused_transformer_stack(x, pad3, sp, *, heads, dim_head):
    """x: (B, N, D) f32; pad3: (B, 1, N) f32; sp: dict of L-stacked fused layer params."""
    B, N, D = x.shape
    L = sp['wqkv'].shape[0]
    F = sp['wff2'].shape[1]
    HD = heads * dim_head
    kernel = functools.partial(_fused_layers_kernel,
                               heads=heads, dim_head=dim_head, ff_dim=F)
    return pl.pallas_call(
        kernel,
        out_shape=jax.ShapeDtypeStruct((B, N, D), jnp.float32),
        grid=(B, L),
        in_specs=[
            pl.BlockSpec((1, N, D), lambda b, l: (b, 0, 0)),        # embedded tokens
            pl.BlockSpec((1, 1, N), lambda b, l: (b, 0, 0)),        # padding mask
            pl.BlockSpec((1, 1, D), lambda b, l: (l, 0, 0)),        # ln gamma (per layer)
            pl.BlockSpec((1, 1, D), lambda b, l: (l, 0, 0)),        # ln beta  (per layer)
            pl.BlockSpec((1, D, 3 * HD), lambda b, l: (l, 0, 0)),   # fused W_qkv
            pl.BlockSpec((1, HD, D), lambda b, l: (l, 0, 0)),       # fused W_out
            pl.BlockSpec((1, D, 2 * F), lambda b, l: (l, 0, 0)),    # fused GEGLU proj
            pl.BlockSpec((1, F, D), lambda b, l: (l, 0, 0)),        # ff out proj
        ],
        out_specs=pl.BlockSpec((1, N, D), lambda b, l: (b, 0, 0)),  # resident across l
        compiler_params=pltpu.CompilerParams(
            dimension_semantics=("parallel", "arbitrary")),
    )(x, pad3, sp['gamma'], sp['beta'], sp['wqkv'], sp['wo'], sp['wff1'], sp['wff2'])


def _fuse_and_stack_layers(layers):
    """Fuse per-head / per-half weights and stack all layers along a leading L axis."""
    wqkv_l, wo_l, wff1_l, wff2_l, gamma_l, beta_l = [], [], [], [], [], []
    for lp in layers:
        H, D, Dh = lp['wq'].shape
        scale = jnp.float32(Dh) ** -0.5

        def flat_heads(w):           # (H, D, Dh) -> (D, H*Dh), head-major columns
            return jnp.transpose(w, (1, 0, 2)).reshape(D, H * Dh)

        wq = flat_heads(lp['wq']) * scale          # fold 1/sqrt(Dh) into W_q
        wk = flat_heads(lp['wk'])
        wv = flat_heads(lp['wv'])
        wqkv_l.append(jnp.concatenate([wq, wk, wv], axis=1))             # (D, 3*H*Dh)
        wo_l.append(lp['wo'].reshape(H * Dh, D))                         # head-major rows
        wff1_l.append(jnp.concatenate([lp['wffx'], lp['wffg']], axis=1))  # (D, 2F)
        wff2_l.append(lp['wff2'])
        gamma_l.append(lp['gamma'])                                      # (1, D)
        beta_l.append(lp['beta'])
    return dict(
        wqkv=jnp.stack(wqkv_l), wo=jnp.stack(wo_l),
        wff1=jnp.stack(wff1_l), wff2=jnp.stack(wff2_l),
        gamma=jnp.stack(gamma_l), beta=jnp.stack(beta_l))


def pretrained_cj_encoder_forward(params, input_ids, attention_mask):
    """PretrainedCJEncoder.forward with run_predictor=True, mask_token_predictor=False,
    pooling_type='first'. Returns (pooled_output (B, D), attention_mask (B, N))."""
    # CJEncoder: SequenceEncoder (synthetic: embedding lookup) -> transformer layers,
    # then CJPredictor layers over the encoder output -- all fused into one pallas_call.
    tokens = jnp.take(params['embedding'], input_ids, axis=0)          # (B, N, D)
    pad3 = attention_mask.astype(jnp.float32)[:, None, :]              # (B, 1, N)
    layers = list(params['encoder_layers']) + list(params['predictor_layers'])
    H, _, Dh = layers[0]['wq'].shape
    stacked = _fuse_and_stack_layers(layers)
    x = fused_transformer_stack(tokens, pad3, stacked, heads=H, dim_head=Dh)
    # pooling_type == 'first'
    pooled = x[:, 0, :]
    return pooled, attention_mask


if __name__ == "__main__":
    # Small synthetic config
    B, N, D = 2, 8, 32
    H, Dh = 2, 16                 # heads, dim_head
    ff_mult = 3
    F = int(D * ff_mult * 2 / 3)  # FeedForward inner dim = 64
    vocab = 50
    enc_layers, pred_layers = 2, 2

    key = jax.random.PRNGKey(0)
    keys = iter(jax.random.split(key, 128))

    def nrm(shape, s=0.02):
        return (s * jax.random.normal(next(keys), shape)).astype(jnp.float32)

    def make_layer():
        return dict(
            gamma=jnp.ones((1, D), jnp.float32),   # torch LayerNorm default init
            beta=jnp.zeros((1, D), jnp.float32),
            wq=nrm((H, D, Dh)),
            wk=nrm((H, D, Dh)),
            wv=nrm((H, D, Dh)),
            wo=nrm((H, Dh, D)),
            wffx=nrm((D, F)),
            wffg=nrm((D, F)),
            wff2=nrm((F, D)),
        )

    params = dict(
        embedding=nrm((vocab, D), s=1.0),
        encoder_layers=[make_layer() for _ in range(enc_layers)],
        predictor_layers=[make_layer() for _ in range(pred_layers)],
    )

    input_ids = jax.random.randint(next(keys), (B, N), 0, vocab)
    attention_mask = jnp.array([[1, 1, 1, 1, 1, 1, 0, 0],
                                [1, 1, 1, 1, 1, 1, 1, 1]], dtype=jnp.int32)

    pooled, out_mask = pretrained_cj_encoder_forward(params, input_ids, attention_mask)
    jax.block_until_ready(pooled)
    assert pooled.shape == (B, D) and out_mask.shape == (B, N)
    assert bool(jnp.all(jnp.isfinite(pooled)))
    print("KERNEL_OK")
</pallas_src>

<mosaic_0001>
module attributes {stable_mosaic.version = 11 : i64} {
  func.func @_fused_layers_kernel(%arg0: i32, %arg1: i32, %arg2: memref<1x8x32xf32, #tpu.memory_space<vmem>>, %arg3: memref<1x1x8xf32, #tpu.memory_space<vmem>>, %arg4: memref<1x1x32xf32, #tpu.memory_space<vmem>>, %arg5: memref<1x1x32xf32, #tpu.memory_space<vmem>>, %arg6: memref<1x32x96xf32, #tpu.memory_space<vmem>>, %arg7: memref<1x32x32xf32, #tpu.memory_space<vmem>>, %arg8: memref<1x32x128xf32, #tpu.memory_space<vmem>>, %arg9: memref<1x64x32xf32, #tpu.memory_space<vmem>>, %arg10: memref<1x8x32xf32, #tpu.memory_space<vmem>>) attributes {dimension_semantics = [#tpu.dimension_semantics<parallel>, #tpu.dimension_semantics<arbitrary>], iteration_bounds = array<i64: 2, 4>, scalar_prefetch = 0 : i64, scratch_operands = 0 : i64, tpu.core_type = #tpu.core_type<tc>, window_params = [{transform_indices = @transform_0, window_bounds = array<i64: 1, 8, 32>}, {transform_indices = @transform_1, window_bounds = array<i64: 1, 1, 8>}, {transform_indices = @transform_2, window_bounds = array<i64: 1, 1, 32>}, {transform_indices = @transform_3, window_bounds = array<i64: 1, 1, 32>}, {transform_indices = @transform_4, window_bounds = array<i64: 1, 32, 96>}, {transform_indices = @transform_5, window_bounds = array<i64: 1, 32, 32>}, {transform_indices = @transform_6, window_bounds = array<i64: 1, 32, 128>}, {transform_indices = @transform_7, window_bounds = array<i64: 1, 64, 32>}, {transform_indices = @transform_8, window_bounds = array<i64: 1, 8, 32>}]} {
    %c0_i32 = arith.constant 0 : i32
    %0 = arith.cmpi eq, %arg1, %c0_i32 : i32
    %1 = arith.extui %0 : i1 to i32
    %c0_i32_0 = arith.constant 0 : i32
    %2 = arith.cmpi ne, %1, %c0_i32_0 : i32
    scf.if %2 {
      %c0_54 = arith.constant 0 : index
      %c0_55 = arith.constant 0 : index
      %c0_56 = arith.constant 0 : index
      %122 = vector.load %arg2[%c0_54, %c0_55, %c0_56] : memref<1x8x32xf32, #tpu.memory_space<vmem>>, vector<1x8x32xf32>
      %c0_57 = arith.constant 0 : index
      %c0_58 = arith.constant 0 : index
      %c0_59 = arith.constant 0 : index
      %123 = vector.load %arg10[%c0_57, %c0_58, %c0_59] : memref<1x8x32xf32, #tpu.memory_space<vmem>>, vector<1x8x32xf32>
      tpu.vector_store %arg10[%c0_57, %c0_58, %c0_59], %122 {strides = array<i32>} : memref<1x8x32xf32, #tpu.memory_space<vmem>>, vector<1x8x32xf32>,
    } else {
    }
    %c0 = arith.constant 0 : index
    %c0_1 = arith.constant 0 : index
    %c0_2 = arith.constant 0 : index
    %3 = vector.load %arg10[%c0, %c0_1, %c0_2] : memref<1x8x32xf32, #tpu.memory_space<vmem>>, vector<1x8x32xf32>
    %4 = vector.shape_cast %3 : vector<1x8x32xf32> to vector<8x32xf32>
    %c0_3 = arith.constant 0 : index
    %c0_4 = arith.constant 0 : index
    %c0_5 = arith.constant 0 : index
    %5 = vector.load %arg3[%c0_3, %c0_4, %c0_5] : memref<1x1x8xf32, #tpu.memory_space<vmem>>, vector<1x1x8xf32>
    %6 = vector.shape_cast %5 : vector<1x1x8xf32> to vector<1x8xf32>
    %c0_6 = arith.constant 0 : index
    %c0_7 = arith.constant 0 : index
    %c0_8 = arith.constant 0 : index
    %7 = vector.load %arg4[%c0_6, %c0_7, %c0_8] : memref<1x1x32xf32, #tpu.memory_space<vmem>>, vector<1x1x32xf32>
    %8 = vector.shape_cast %7 : vector<1x1x32xf32> to vector<1x32xf32>
    %c0_9 = arith.constant 0 : index
    %c0_10 = arith.constant 0 : index
    %c0_11 = arith.constant 0 : index
    %9 = vector.load %arg5[%c0_9, %c0_10, %c0_11] : memref<1x1x32xf32, #tpu.memory_space<vmem>>, vector<1x1x32xf32>
    %10 = vector.shape_cast %9 : vector<1x1x32xf32> to vector<1x32xf32>
    %c0_12 = arith.constant 0 : index
    %c0_13 = arith.constant 0 : index
    %c0_14 = arith.constant 0 : index
    %11 = vector.load %arg6[%c0_12, %c0_13, %c0_14] : memref<1x32x96xf32, #tpu.memory_space<vmem>>, vector<1x32x96xf32>
    %12 = vector.shape_cast %11 : vector<1x32x96xf32> to vector<32x96xf32>
    %c0_15 = arith.constant 0 : index
    %c0_16 = arith.constant 0 : index
    %c0_17 = arith.constant 0 : index
    %13 = vector.load %arg7[%c0_15, %c0_16, %c0_17] : memref<1x32x32xf32, #tpu.memory_space<vmem>>, vector<1x32x32xf32>
    %14 = vector.shape_cast %13 : vector<1x32x32xf32> to vector<32x32xf32>
    %c0_18 = arith.constant 0 : index
    %c0_19 = arith.constant 0 : index
    %c0_20 = arith.constant 0 : index
    %15 = vector.load %arg8[%c0_18, %c0_19, %c0_20] : memref<1x32x128xf32, #tpu.memory_space<vmem>>, vector<1x32x128xf32>
    %16 = vector.shape_cast %15 : vector<1x32x128xf32> to vector<32x128xf32>
    %c0_21 = arith.constant 0 : index
    %c0_22 = arith.constant 0 : index
    %c0_23 = arith.constant 0 : index
    %17 = vector.load %arg9[%c0_21, %c0_22, %c0_23] : memref<1x64x32xf32, #tpu.memory_space<vmem>>, vector<1x64x32xf32>
    %18 = vector.shape_cast %17 : vector<1x64x32xf32> to vector<64x32xf32>
    %cst = arith.constant 5.000000e-01 : f32
    %19 = vector.broadcast %cst : f32 to vector<1x8xf32>
    %20 = arith.cmpf ole, %6, %19 : vector<1x8xf32>
    %cst_24 = arith.constant dense<0.000000e+00> : vector<8xf32>
    %21 = vector.multi_reduction <add>, %4, %cst_24 [1] : vector<8x32xf32> to vector<8xf32>
    %22 = vector.shape_cast %21 : vector<8xf32> to vector<8x1xf32>
    %cst_25 = arith.constant 3.200000e+01 : f32
    %23 = vector.broadcast %cst_25 : f32 to vector<8x1xf32>
    %24 = arith.divf %22, %23 : vector<8x1xf32>
    %25 = vector.broadcast %24 : vector<8x1xf32> to vector<8x32xf32>
    %26 = arith.subf %4, %25 : vector<8x32xf32>
    %27 = arith.mulf %26, %26 : vector<8x32xf32>
    %cst_26 = arith.constant dense<0.000000e+00> : vector<8xf32>
    %28 = vector.multi_reduction <add>, %27, %cst_26 [1] : vector<8x32xf32> to vector<8xf32>
    %29 = vector.shape_cast %28 : vector<8xf32> to vector<8x1xf32>
    %cst_27 = arith.constant 3.200000e+01 : f32
    %30 = vector.broadcast %cst_27 : f32 to vector<8x1xf32>
    %31 = arith.divf %29, %30 : vector<8x1xf32>
    %32 = vector.broadcast %24 : vector<8x1xf32> to vector<8x32xf32>
    %33 = arith.subf %4, %32 : vector<8x32xf32>
    %cst_28 = arith.constant 9.99999974E-6 : f32
    %34 = vector.broadcast %cst_28 : f32 to vector<8x1xf32>
    %35 = arith.addf %31, %34 : vector<8x1xf32>
    %36 = math.rsqrt %35 : vector<8x1xf32>
    %37 = vector.broadcast %36 : vector<8x1xf32> to vector<8x32xf32>
    %38 = arith.mulf %33, %37 : vector<8x32xf32>
    %39 = vector.broadcast %8 : vector<1x32xf32> to vector<8x32xf32>
    %40 = arith.mulf %38, %39 : vector<8x32xf32>
    %41 = vector.broadcast %10 : vector<1x32xf32> to vector<8x32xf32>
    %42 = arith.addf %40, %41 : vector<8x32xf32>
    %cst_29 = arith.constant dense<0.000000e+00> : vector<8x96xf32>
    %43 = tpu.matmul %42, %12, %cst_29 {dimension_numbers = #tpu.dot_dimension_numbers<[1], [0], [0], [1], [0, 0, 1, 1], [], []>} : vector<8x32xf32>, vector<32x96xf32>, vector<8x96xf32> -> vector<8x96xf32>
    %44 = vector.extract_strided_slice %43 {offsets = [0, 0], sizes = [8, 16], strides = [1, 1]} : vector<8x96xf32> to vector<8x16xf32>
    %45 = vector.extract_strided_slice %43 {offsets = [0, 32], sizes = [8, 16], strides = [1, 1]} : vector<8x96xf32> to vector<8x16xf32>
    %46 = vector.extract_strided_slice %43 {offsets = [0, 64], sizes = [8, 16], strides = [1, 1]} : vector<8x96xf32> to vector<8x16xf32>
    %cst_30 = arith.constant dense<0.000000e+00> : vector<8x8xf32>
    %47 = tpu.matmul %44, %45, %cst_30 {dimension_numbers = #tpu.dot_dimension_numbers<[1], [1], [0], [0], [0, 0, 1, 0], [], []>} : vector<8x16xf32>, vector<8x16xf32>, vector<8x8xf32> -> vector<8x8xf32>
    %cst_31 = arith.constant -1.000000e+30 : f32
    %48 = vector.shape_cast %20 : vector<1x8xi1> to vector<1x8xi1>
    %49 = vector.broadcast %48 : vector<1x8xi1> to vector<8x8xi1>
    %50 = vector.broadcast %cst_31 : f32 to vector<8x8xf32>
    %51 = arith.select %49, %50, %47 : vector<8x8xi1>, vector<8x8xf32>
    %cst_32 = arith.constant dense<0xFF800000> : vector<8xf32>
    %52 = vector.multi_reduction <maximumf>, %51, %cst_32 [1] : vector<8x8xf32> to vector<8xf32>
    %53 = vector.shape_cast %52 : vector<8xf32> to vector<8x1xf32>
    %54 = vector.broadcast %53 : vector<8x1xf32> to vector<8x8xf32>
    %55 = arith.subf %51, %54 : vector<8x8xf32>
    %56 = math.exp %55 : vector<8x8xf32>
    %cst_33 = arith.constant dense<0.000000e+00> : vector<8xf32>
    %57 = vector.multi_reduction <add>, %56, %cst_33 [1] : vector<8x8xf32> to vector<8xf32>
    %58 = vector.shape_cast %57 : vector<8xf32> to vector<8x1xf32>
    %59 = vector.broadcast %58 : vector<8x1xf32> to vector<8x8xf32>
    %60 = arith.divf %56, %59 : vector<8x8xf32>
    %cst_34 = arith.constant dense<0.000000e+00> : vector<8x16xf32>
    %61 = tpu.matmul %60, %46, %cst_34 {dimension_numbers = #tpu.dot_dimension_numbers<[1], [0], [0], [1], [0, 0, 1, 1], [], []>} : vector<8x8xf32>, vector<8x16xf32>, vector<8x16xf32> -> vector<8x16xf32>
    %62 = vector.extract_strided_slice %43 {offsets = [0, 16], sizes = [8, 16], strides = [1, 1]} : vector<8x96xf32> to vector<8x16xf32>
    %63 = vector.extract_strided_slice %43 {offsets = [0, 48], sizes = [8, 16], strides = [1, 1]} : vector<8x96xf32> to vector<8x16xf32>
    %64 = vector.extract_strided_slice %43 {offsets = [0, 80], sizes = [8, 16], strides = [1, 1]} : vector<8x96xf32> to vector<8x16xf32>
    %cst_35 = arith.constant dense<0.000000e+00> : vector<8x8xf32>
    %65 = tpu.matmul %62, %63, %cst_35 {dimension_numbers = #tpu.dot_dimension_numbers<[1], [1], [0], [0], [0, 0, 1, 0], [], []>} : vector<8x16xf32>, vector<8x16xf32>, vector<8x8xf32> -> vector<8x8xf32>
    %cst_36 = arith.constant -1.000000e+30 : f32
    %66 = vector.shape_cast %20 : vector<1x8xi1> to vector<1x8xi1>
    %67 = vector.broadcast %66 : vector<1x8xi1> to vector<8x8xi1>
    %68 = vector.broadcast %cst_36 : f32 to vector<8x8xf32>
    %69 = arith.select %67, %68, %65 : vector<8x8xi1>, vector<8x8xf32>
    %cst_37 = arith.constant dense<0xFF800000> : vector<8xf32>
    %70 = vector.multi_reduction <maximumf>, %69, %cst_37 [1] : vector<8x8xf32> to vector<8xf32>
    %71 = vector.shape_cast %70 : vector<8xf32> to vector<8x1xf32>
    %72 = vector.broadcast %71 : vector<8x1xf32> to vector<8x8xf32>
    %73 = arith.subf %69, %72 : vector<8x8xf32>
    %74 = math.exp %73 : vector<8x8xf32>
    %cst_38 = arith.constant dense<0.000000e+00> : vector<8xf32>
    %75 = vector.multi_reduction <add>, %74, %cst_38 [1] : vector<8x8xf32> to vector<8xf32>
    %76 = vector.shape_cast %75 : vector<8xf32> to vector<8x1xf32>
    %77 = vector.broadcast %76 : vector<8x1xf32> to vector<8x8xf32>
    %78 = arith.divf %74, %77 : vector<8x8xf32>
    %cst_39 = arith.constant dense<0.000000e+00> : vector<8x16xf32>
    %79 = tpu.matmul %78, %64, %cst_39 {dimension_numbers = #tpu.dot_dimension_numbers<[1], [0], [0], [1], [0, 0, 1, 1], [], []>} : vector<8x8xf32>, vector<8x16xf32>, vector<8x16xf32> -> vector<8x16xf32>
    %80 = tpu.concatenate %61, %79 in 1 : vector<8x16xf32>, vector<8x16xf32> -> vector<8x32xf32>
    %cst_40 = arith.constant dense<0.000000e+00> : vector<8x32xf32>
    %81 = tpu.matmul %80, %14, %cst_40 {dimension_numbers = #tpu.dot_dimension_numbers<[1], [0], [0], [1], [0, 0, 1, 1], [], []>} : vector<8x32xf32>, vector<32x32xf32>, vector<8x32xf32> -> vector<8x32xf32>
    %82 = arith.addf %81, %42 : vector<8x32xf32>
    %cst_41 = arith.constant dense<0.000000e+00> : vector<8xf32>
    %83 = vector.multi_reduction <add>, %82, %cst_41 [1] : vector<8x32xf32> to vector<8xf32>
    %84 = vector.shape_cast %83 : vector<8xf32> to vector<8x1xf32>
    %cst_42 = arith.constant 3.200000e+01 : f32
    %85 = vector.broadcast %cst_42 : f32 to vector<8x1xf32>
    %86 = arith.divf %84, %85 : vector<8x1xf32>
    %87 = vector.broadcast %86 : vector<8x1xf32> to vector<8x32xf32>
    %88 = arith.subf %82, %87 : vector<8x32xf32>
    %89 = arith.mulf %88, %88 : vector<8x32xf32>
    %cst_43 = arith.constant dense<0.000000e+00> : vector<8xf32>
    %90 = vector.multi_reduction <add>, %89, %cst_43 [1] : vector<8x32xf32> to vector<8xf32>
    %91 = vector.shape_cast %90 : vector<8xf32> to vector<8x1xf32>
    %cst_44 = arith.constant 3.200000e+01 : f32
    %92 = vector.broadcast %cst_44 : f32 to vector<8x1xf32>
    %93 = arith.divf %91, %92 : vector<8x1xf32>
    %94 = vector.broadcast %86 : vector<8x1xf32> to vector<8x32xf32>
    %95 = arith.subf %82, %94 : vector<8x32xf32>
    %cst_45 = arith.constant 9.99999974E-6 : f32
    %96 = vector.broadcast %cst_45 : f32 to vector<8x1xf32>
    %97 = arith.addf %93, %96 : vector<8x1xf32>
    %98 = math.rsqrt %97 : vector<8x1xf32>
    %99 = vector.broadcast %98 : vector<8x1xf32> to vector<8x32xf32>
    %100 = arith.mulf %95, %99 : vector<8x32xf32>
    %101 = vector.broadcast %8 : vector<1x32xf32> to vector<8x32xf32>
    %102 = arith.mulf %100, %101 : vector<8x32xf32>
    %103 = vector.broadcast %10 : vector<1x32xf32> to vector<8x32xf32>
    %104 = arith.addf %102, %103 : vector<8x32xf32>
    %cst_46 = arith.constant dense<0.000000e+00> : vector<8x128xf32>
    %105 = tpu.matmul %104, %16, %cst_46 {dimension_numbers = #tpu.dot_dimension_numbers<[1], [0], [0], [1], [0, 0, 1, 1], [], []>} : vector<8x32xf32>, vector<32x128xf32>, vector<8x128xf32> -> vector<8x128xf32>
    %106 = vector.extract_strided_slice %105 {offsets = [0, 0], sizes = [8, 64], strides = [1, 1]} : vector<8x128xf32> to vector<8x64xf32>
    %107 = vector.extract_strided_slice %105 {offsets = [0, 64], sizes = [8, 64], strides = [1, 1]} : vector<8x128xf32> to vector<8x64xf32>
    %cst_47 = arith.constant 5.000000e-01 : f32
    %108 = vector.broadcast %cst_47 : f32 to vector<8x64xf32>
    %109 = arith.mulf %108, %107 : vector<8x64xf32>
    %cst_48 = arith.constant 0.707106769 : f32
    %110 = vector.broadcast %cst_48 : f32 to vector<8x64xf32>
    %111 = arith.mulf %107, %110 : vector<8x64xf32>
    %112 = math.erf %111 : vector<8x64xf32>
    %cst_49 = arith.constant 1.000000e+00 : f32
    %113 = vector.broadcast %cst_49 : f32 to vector<8x64xf32>
    %114 = arith.addf %113, %112 : vector<8x64xf32>
    %115 = arith.mulf %109, %114 : vector<8x64xf32>
    %116 = arith.mulf %115, %106 : vector<8x64xf32>
    %cst_50 = arith.constant dense<0.000000e+00> : vector<8x32xf32>
    %117 = tpu.matmul %116, %18, %cst_50 {dimension_numbers = #tpu.dot_dimension_numbers<[1], [0], [0], [1], [0, 0, 1, 1], [], []>} : vector<8x64xf32>, vector<64x32xf32>, vector<8x32xf32> -> vector<8x32xf32>
    %118 = arith.addf %117, %104 : vector<8x32xf32>
    %c0_51 = arith.constant 0 : index
    %c0_52 = arith.constant 0 : index
    %c0_53 = arith.constant 0 : index
    %119 = vector.load %arg10[%c0_51, %c0_52, %c0_53] : memref<1x8x32xf32, #tpu.memory_space<vmem>>, vector<1x8x32xf32>
    %120 = vector.shape_cast %119 : vector<1x8x32xf32> to vector<8x32xf32>
    %121 = vector.shape_cast %118 : vector<8x32xf32> to vector<1x8x32xf32>
    tpu.vector_store %arg10[%c0_51, %c0_52, %c0_53], %121 {strides = array<i32>} : memref<1x8x32xf32, #tpu.memory_space<vmem>>, vector<1x8x32xf32>,
    return
  }
  func.func @transform_0(%arg0: i32, %arg1: i32) -> (i32, i32, i32) {
    %c0_i32 = arith.constant 0 : i32
    %c0_i32_0 = arith.constant 0 : i32
    %c0_i32_1 = arith.constant 0 : i32
    return %arg0, %c0_i32, %c0_i32_0 : i32, i32, i32
  }
  func.func @transform_1(%arg0: i32, %arg1: i32) -> (i32, i32, i32) {
    %c0_i32 = arith.constant 0 : i32
    %c0_i32_0 = arith.constant 0 : i32
    %c0_i32_1 = arith.constant 0 : i32
    return %arg0, %c0_i32, %c0_i32_0 : i32, i32, i32
  }
  func.func @transform_2(%arg0: i32, %arg1: i32) -> (i32, i32, i32) {
    %c0_i32 = arith.constant 0 : i32
    %c0_i32_0 = arith.constant 0 : i32
    %c0_i32_1 = arith.constant 0 : i32
    return %arg1, %c0_i32, %c0_i32_0 : i32, i32, i32
  }
  func.func @transform_3(%arg0: i32, %arg1: i32) -> (i32, i32, i32) {
    %c0_i32 = arith.constant 0 : i32
    %c0_i32_0 = arith.constant 0 : i32
    %c0_i32_1 = arith.constant 0 : i32
    return %arg1, %c0_i32, %c0_i32_0 : i32, i32, i32
  }
  func.func @transform_4(%arg0: i32, %arg1: i32) -> (i32, i32, i32) {
    %c0_i32 = arith.constant 0 : i32
    %c0_i32_0 = arith.constant 0 : i32
    %c0_i32_1 = arith.constant 0 : i32
    return %arg1, %c0_i32, %c0_i32_0 : i32, i32, i32
  }
  func.func @transform_5(%arg0: i32, %arg1: i32) -> (i32, i32, i32) {
    %c0_i32 = arith.constant 0 : i32
    %c0_i32_0 = arith.constant 0 : i32
    %c0_i32_1 = arith.constant 0 : i32
    return %arg1, %c0_i32, %c0_i32_0 : i32, i32, i32
  }
  func.func @transform_6(%arg0: i32, %arg1: i32) -> (i32, i32, i32) {
    %c0_i32 = arith.constant 0 : i32
    %c0_i32_0 = arith.constant 0 : i32
    %c0_i32_1 = arith.constant 0 : i32
    return %arg1, %c0_i32, %c0_i32_0 : i32, i32, i32
  }
  func.func @transform_7(%arg0: i32, %arg1: i32) -> (i32, i32, i32) {
    %c0_i32 = arith.constant 0 : i32
    %c0_i32_0 = arith.constant 0 : i32
    %c0_i32_1 = arith.constant 0 : i32
    return %arg1, %c0_i32, %c0_i32_0 : i32, i32, i32
  }
  func.func @transform_8(%arg0: i32, %arg1: i32) -> (i32, i32, i32) {
    %c0_i32 = arith.constant 0 : i32
    %c0_i32_0 = arith.constant 0 : i32
    %c0_i32_1 = arith.constant 0 : i32
    return %arg0, %c0_i32, %c0_i32_0 : i32, i32, i32
  }
}

</mosaic_0001>

<llo_original>
// kernel: tpu_custom_call.1
$region0: #{tpu_custom_call.1}
  #allocation0 [shape = 'u32[]', space=smem, size = 0x4, offset = 0x4, fixed_abs, tag = 'smem constant byte address 0x4 - core index']
  #allocation1 [shape = 'u32[144,128]{1,0:T(1,128)}', space=vmem, size = 0x12000, scoped, tag = 'internal scratch']
  %s0 = inlined_call_operand.hbm [shape: f32[2,8,32], index: 0, kind: input, shape index: {}]
  %s1 = inlined_call_operand.hbm [shape: f32[2,1,8], index: 1, kind: input, shape index: {}]
  %s2 = inlined_call_operand.vmem [shape: f32[4,1,32], index: 2, kind: input, shape index: {}]
  %s3 = inlined_call_operand.hbm [shape: f32[4,1,32], index: 3, kind: input, shape index: {}]
  %s4 = inlined_call_operand.vmem [shape: f32[4,32,96], index: 4, kind: input, shape index: {}]
  %s5 = inlined_call_operand.vmem [shape: f32[4,32,32], index: 5, kind: input, shape index: {}]
  %s6 = inlined_call_operand.vmem [shape: f32[4,32,128], index: 6, kind: input, shape index: {}]
  %s7 = inlined_call_operand.vmem [shape: f32[4,64,32], index: 7, kind: input, shape index: {}]
  %s8 = inlined_call_operand.hbm [shape: f32[2,8,32], index: 8, kind: output, shape index: {}]
  %s9 = sld [smem:[#allocation0]]
  $region81: #{tpu_custom_call.1} parent=0
    _
  %s11 = ssub.s32 1, %s9
  %s12 = scalar_select 0, %s11, %s9
  $region1: #{tpu_custom_call.1} parent=0
    #allocation2 [shape = 'u8[8192]{0}', space=vmem, size = 0x2000, scoped, tag = 'input window, operand 0']
    #allocation3 [shape = 's32[2]{0}', space=sflag, size = 0x8, scoped, tag = 'scoped memory for tpu_custom_call.1']
    #allocation4 [shape = 's32[2]{0}', space=sflag, size = 0x8, scoped, tag = 'scoped memory for tpu_custom_call.1']
    #allocation5 [shape = 'u8[1024]{0}', space=vmem, size = 0x400, scoped, tag = 'input window, operand 1']
    #allocation6 [shape = 's32[2]{0}', space=sflag, size = 0x8, scoped, tag = 'scoped memory for tpu_custom_call.1']
    #allocation7 [shape = 'u8[1024]{0}', space=vmem, size = 0x400, scoped, tag = 'input window, operand 3']
    #allocation8 [shape = 'u8[8192]{0}', space=vmem, size = 0x2000, scoped, tag = 'output window, operand 0']
    %13 = vsyncpa [#allocation3], 0
    %s14 = scalar_lea.sflag [#allocation3], 1
    %15 = vsyncpa %s14, 0
    %16 = vsyncpa [#allocation6], 0
    %s17 = scalar_lea.sflag [#allocation6], 1
    %18 = vsyncpa %s17, 0
    %19 = vsyncpa [#allocation4], 0
    %s20 = scalar_lea.sflag [#allocation4], 1
    %21 = vsyncpa %s20, 0
    loop: start=0, step=1, limit=10
    $region2: #{tpu_custom_call.1} parent=1 // loop_pre_header
      _
    $region3: #{tpu_custom_call.1} parent=1 // loop_header
      %s23 = sphi 0, %s27
      %p24 = scmp.ge.s32.totalorder %s23, 10
      %s30 = sphi 0, %s42
      %s31 = sphi 0, %s38
      %s32 = sphi 0, %s30
      %s33 = sphi 0, %s31
      %s34 = sphi 0, %s32
      %s35 = sphi 0, %s33
      %s45 = sphi 0, %s47
      %s48 = sphi 0, %s45
      %s49 = sphi 0, %s48
      %s65 = sphi 0, %s49
      %s71 = sphi 0, %s73
      %s74 = sphi 0, %s71
      %s75 = sphi 0, %s74
      %s91 = sphi 0, %s75
      %s97 = sphi 0, %s99
      %s100 = sphi 0, %s97
      %s101 = sphi 0, %s100
      %s117 = sphi 0, %s101
      %s123 = sphi 0, %s125
      %s126 = sphi 0, %s123
      %s127 = sphi 0, %s126
      %s143 = sphi 0, %s127
      %s149 = sphi 0, %s151
      %s152 = sphi 0, %s149
      %s153 = sphi 0, %s152
      %s169 = sphi 0, %s153
      %s175 = sphi 0, %s177
      %s178 = sphi 0, %s175
      %s179 = sphi 0, %s178
      %s195 = sphi 0, %s179
      %s201 = sphi 0, %s203
      %s204 = sphi 0, %s201
      %s205 = sphi 0, %s204
      %s221 = sphi 0, %s205
      %s227 = sphi 0, %s229
      %s230 = sphi 0, %s227
      %s231 = sphi 0, %s230
      %s247 = sphi 0, %s231
      %s253 = sphi 0, %s255
      %s256 = sphi 0, %s253
      %s257 = sphi 0, %s256
      %s273 = sphi 0, %s257
    $region4: #{tpu_custom_call.1} parent=1 // loop_header_branch
      %26 = sbr.rel (%p24) target = $region8
    $region5: #{tpu_custom_call.1} parent=1 // loop_body
      %s28 = ssub.s32 %s23, 1
      %s29 = ssub.s32 %s23, 2
      %s36 = sadd.s32 1, %s31
      %p37 = scmp.ge.s32.totalorder %s36, 4
      %s38 = scalar_select %p37, 0, %s36
      %s39 = sadd.s32 1, %s30
      %s40 = scalar_select %p37, %s39, %s30
      %p41 = scmp.ge.s32.totalorder %s40, 2
      %s42 = scalar_select %p41, 0, %s40
      %s43 = ssub.s32 %s30, %s42
      %p44 = scmp.eq.s32.totalorder %s43, 0
      %s46 = sadd.s32 %s45, 1
      %s47 = scalar_select %p44, %s45, %s46
      %p50 = pneg %p44
      %p51 = scmp.eq.s32.totalorder %s23, 7
      %p52 = por %p50, %p51
      %p53 = scmp.ne.s32.totalorder %s45, %s48
      %p54 = scmp.eq.s32.totalorder %s23, 0
      %p55 = por %p53, %p54
      %p56 = scmp.ne.s32.totalorder %s45, %s48
      %p57 = scmp.eq.s32.totalorder %s28, 7
      %p58 = por %p56, %p57
      %p59 = scmp.ne.s32.totalorder %s48, %s49
      %p60 = scmp.eq.s32.totalorder %s28, 0
      %p61 = por %p59, %p60
      %p62 = scmp.ne.s32.totalorder %s48, %s49
      %p63 = scmp.eq.s32.totalorder %s29, 7
      %p64 = por %p62, %p63
      %p66 = scmp.ne.s32.totalorder %s49, %s65
      %p67 = scmp.eq.s32.totalorder %s29, 0
      %p68 = por %p66, %p67
      %s69 = ssub.s32 %s30, %s42
      %p70 = scmp.eq.s32.totalorder %s69, 0
      %s72 = sadd.s32 %s71, 1
      %s73 = scalar_select %p70, %s71, %s72
      %p76 = pneg %p70
      %p77 = scmp.eq.s32.totalorder %s23, 7
      %p78 = por %p76, %p77
      %p79 = scmp.ne.s32.totalorder %s71, %s74
      %p80 = scmp.eq.s32.totalorder %s23, 0
      %p81 = por %p79, %p80
      %p82 = scmp.ne.s32.totalorder %s71, %s74
      %p83 = scmp.eq.s32.totalorder %s28, 7
      %p84 = por %p82, %p83
      %p85 = scmp.ne.s32.totalorder %s74, %s75
      %p86 = scmp.eq.s32.totalorder %s28, 0
      %p87 = por %p85, %p86
      %p88 = scmp.ne.s32.totalorder %s74, %s75
      %p89 = scmp.eq.s32.totalorder %s29, 7
      %p90 = por %p88, %p89
      %p92 = scmp.ne.s32.totalorder %s75, %s91
      %p93 = scmp.eq.s32.totalorder %s29, 0
      %p94 = por %p92, %p93
      %s95 = ssub.s32 %s31, %s38
      %p96 = scmp.eq.s32.totalorder %s95, 0
      %s98 = sadd.s32 %s97, 1
      %s99 = scalar_select %p96, %s97, %s98
      %p102 = pneg %p96
      %p103 = scmp.eq.s32.totalorder %s23, 7
      %p104 = por %p102, %p103
      %p105 = scmp.ne.s32.totalorder %s97, %s100
      %p106 = scmp.eq.s32.totalorder %s23, 0
      %p107 = por %p105, %p106
      %p108 = scmp.ne.s32.totalorder %s97, %s100
      %p109 = scmp.eq.s32.totalorder %s28, 7
      %p110 = por %p108, %p109
      %p111 = scmp.ne.s32.totalorder %s100, %s101
      %p112 = scmp.eq.s32.totalorder %s28, 0
      %p113 = por %p111, %p112
      %p114 = scmp.ne.s32.totalorder %s100, %s101
      %p115 = scmp.eq.s32.totalorder %s29, 7
      %p116 = por %p114, %p115
      %p118 = scmp.ne.s32.totalorder %s101, %s117
      %p119 = scmp.eq.s32.totalorder %s29, 0
      %p120 = por %p118, %p119
      %s121 = ssub.s32 %s31, %s38
      %p122 = scmp.eq.s32.totalorder %s121, 0
      %s124 = sadd.s32 %s123, 1
      %s125 = scalar_select %p122, %s123, %s124
      %p128 = pneg %p122
      %p129 = scmp.eq.s32.totalorder %s23, 7
      %p130 = por %p128, %p129
      %p131 = scmp.ne.s32.totalorder %s123, %s126
      %p132 = scmp.eq.s32.totalorder %s23, 0
      %p133 = por %p131, %p132
      %p134 = scmp.ne.s32.totalorder %s123, %s126
      %p135 = scmp.eq.s32.totalorder %s28, 7
      %p136 = por %p134, %p135
      %p137 = scmp.ne.s32.totalorder %s126, %s127
      %p138 = scmp.eq.s32.totalorder %s28, 0
      %p139 = por %p137, %p138
      %p140 = scmp.ne.s32.totalorder %s126, %s127
      %p141 = scmp.eq.s32.totalorder %s29, 7
      %p142 = por %p140, %p141
      %p144 = scmp.ne.s32.totalorder %s127, %s143
      %p145 = scmp.eq.s32.totalorder %s29, 0
      %p146 = por %p144, %p145
      %s147 = ssub.s32 %s31, %s38
      %p148 = scmp.eq.s32.totalorder %s147, 0
      %s150 = sadd.s32 %s149, 1
      %s151 = scalar_select %p148, %s149, %s150
      %p154 = pneg %p148
      %p155 = scmp.eq.s32.totalorder %s23, 7
      %p156 = por %p154, %p155
      %p157 = scmp.ne.s32.totalorder %s149, %s152
      %p158 = scmp.eq.s32.totalorder %s23, 0
      %p159 = por %p157, %p158
      %p160 = scmp.ne.s32.totalorder %s149, %s152
      %p161 = scmp.eq.s32.totalorder %s28, 7
      %p162 = por %p160, %p161
      %p163 = scmp.ne.s32.totalorder %s152, %s153
      %p164 = scmp.eq.s32.totalorder %s28, 0
      %p165 = por %p163, %p164
      %p166 = scmp.ne.s32.totalorder %s152, %s153
      %p167 = scmp.eq.s32.totalorder %s29, 7
      %p168 = por %p166, %p167
      %p170 = scmp.ne.s32.totalorder %s153, %s169
      %p171 = scmp.eq.s32.totalorder %s29, 0
      %p172 = por %p170, %p171
      %s173 = ssub.s32 %s31, %s38
      %p174 = scmp.eq.s32.totalorder %s173, 0
      %s176 = sadd.s32 %s175, 1
      %s177 = scalar_select %p174, %s175, %s176
      %p180 = pneg %p174
      %p181 = scmp.eq.s32.totalorder %s23, 7
      %p182 = por %p180, %p181
      %p183 = scmp.ne.s32.totalorder %s175, %s178
      %p184 = scmp.eq.s32.totalorder %s23, 0
      %p185 = por %p183, %p184
      %p186 = scmp.ne.s32.totalorder %s175, %s178
      %p187 = scmp.eq.s32.totalorder %s28, 7
      %p188 = por %p186, %p187
      %p189 = scmp.ne.s32.totalorder %s178, %s179
      %p190 = scmp.eq.s32.totalorder %s28, 0
      %p191 = por %p189, %p190
      %p192 = scmp.ne.s32.totalorder %s178, %s179
      %p193 = scmp.eq.s32.totalorder %s29, 7
      %p194 = por %p192, %p193
      %p196 = scmp.ne.s32.totalorder %s179, %s195
      %p197 = scmp.eq.s32.totalorder %s29, 0
      %p198 = por %p196, %p197
      %s199 = ssub.s32 %s31, %s38
      %p200 = scmp.eq.s32.totalorder %s199, 0
      %s202 = sadd.s32 %s201, 1
      %s203 = scalar_select %p200, %s201, %s202
      %p206 = pneg %p200
      %p207 = scmp.eq.s32.totalorder %s23, 7
      %p208 = por %p206, %p207
      %p209 = scmp.ne.s32.totalorder %s201, %s204
      %p210 = scmp.eq.s32.totalorder %s23, 0
      %p211 = por %p209, %p210
      %p212 = scmp.ne.s32.totalorder %s201, %s204
      %p213 = scmp.eq.s32.totalorder %s28, 7
      %p214 = por %p212, %p213
      %p215 = scmp.ne.s32.totalorder %s204, %s205
      %p216 = scmp.eq.s32.totalorder %s28, 0
      %p217 = por %p215, %p216
      %p218 = scmp.ne.s32.totalorder %s204, %s205
      %p219 = scmp.eq.s32.totalorder %s29, 7
      %p220 = por %p218, %p219
      %p222 = scmp.ne.s32.totalorder %s205, %s221
      %p223 = scmp.eq.s32.totalorder %s29, 0
      %p224 = por %p222, %p223
      %s225 = ssub.s32 %s31, %s38
      %p226 = scmp.eq.s32.totalorder %s225, 0
      %s228 = sadd.s32 %s227, 1
      %s229 = scalar_select %p226, %s227, %s228
      %p232 = pneg %p226
      %p233 = scmp.eq.s32.totalorder %s23, 7
      %p234 = por %p232, %p233
      %p235 = scmp.ne.s32.totalorder %s227, %s230
      %p236 = scmp.eq.s32.totalorder %s23, 0
      %p237 = por %p235, %p236
      %p238 = scmp.ne.s32.totalorder %s227, %s230
      %p239 = scmp.eq.s32.totalorder %s28, 7
      %p240 = por %p238, %p239
      %p241 = scmp.ne.s32.totalorder %s230, %s231
      %p242 = scmp.eq.s32.totalorder %s28, 0
      %p243 = por %p241, %p242
      %p244 = scmp.ne.s32.totalorder %s230, %s231
      %p245 = scmp.eq.s32.totalorder %s29, 7
      %p246 = por %p244, %p245
      %p248 = scmp.ne.s32.totalorder %s231, %s247
      %p249 = scmp.eq.s32.totalorder %s29, 0
      %p250 = por %p248, %p249
      %s251 = ssub.s32 %s30, %s42
      %p252 = scmp.eq.s32.totalorder %s251, 0
      %s254 = sadd.s32 %s253, 1
      %s255 = scalar_select %p252, %s253, %s254
      %p258 = pneg %p252
      %p259 = scmp.eq.s32.totalorder %s23, 7
      %p260 = por %p258, %p259
      %p261 = scmp.ne.s32.totalorder %s253, %s256
      %p262 = scmp.eq.s32.totalorder %s23, 0
      %p263 = por %p261, %p262
      %p264 = scmp.ne.s32.totalorder %s253, %s256
      %p265 = scmp.eq.s32.totalorder %s28, 7
      %p266 = por %p264, %p265
      %p267 = scmp.ne.s32.totalorder %s256, %s257
      %p268 = scmp.eq.s32.totalorder %s28, 0
      %p269 = por %p267, %p268
      %p270 = scmp.ne.s32.totalorder %s256, %s257
      %p271 = scmp.eq.s32.totalorder %s29, 7
      %p272 = por %p270, %p271
      %p274 = scmp.ne.s32.totalorder %s257, %s273
      %p275 = scmp.eq.s32.totalorder %s29, 0
      %p276 = por %p274, %p275
      %p277 = scmp.le.s32.totalorder 1, %s23
      %p278 = scmp.lt.s32.totalorder %s23, 9
      %p279 = pnand %p277, %p278
      %p280 = pneg %p279
      // Predicated region
      $region9: #{tpu_custom_call.1} parent=5 // pred_check
        _
      $region10: #{tpu_custom_call.1} parent=5 // pred_check_branch
        %282 = sbr.rel (%p279) target = $region12
      $region11: #{tpu_custom_call.1} parent=5 // pred_region
        %s283 = ssub.s32 %s23, 1
      $region12: #{tpu_custom_call.1} parent=5 // pred_fallthru
        _
      %p284 = scmp.lt.s32.totalorder %s23, 8
      // Predicated region
      $region13: #{tpu_custom_call.1} parent=5 // pred_check
        %p285 = pneg %p284
      $region14: #{tpu_custom_call.1} parent=5 // pred_check_branch
        %287 = sbr.rel (%p285) target = $region16
      $region15: #{tpu_custom_call.1} parent=5 // pred_region
        // Predicated region
        $region17: #{tpu_custom_call.1} parent=15 // pred_check
          %p288 = pneg %p55
        $region18: #{tpu_custom_call.1} parent=15 // pred_check_branch
          %290 = sbr.rel (%p288) target = $region20
        $region19: #{tpu_custom_call.1} parent=15 // pred_region
          %s291 = sand.u32 %s45, 1
          %s292 = scalar_lea.sflag [#allocation3], %s291
          %s293 = sand.u32 %s45, 1
          %s294 = smul.addr %s293, 8
          %s295 = scalar_lea.vmem [#allocation2], %s294
          %s297 = ssub.s32 128, 128
          %298 = vsyncadd %s292, %s297
          %s299 = smul.addr %s30, 128
          %s300 = scalar_lea.hbm %s0, %s299
          %s302 = sshll.u32 %s295, 4
          %s303 = int_to_ptr.vmem [resolvable:$true] %s302
          %305 = dma.hbm_to_vmem [thread:$0]  %s300, 128, %s303, %s292
        $region20: #{tpu_custom_call.1} parent=15 // pred_fallthru
          _
        // Predicated region
        $region21: #{tpu_custom_call.1} parent=15 // pred_check
          %p306 = pneg %p81
        $region22: #{tpu_custom_call.1} parent=15 // pred_check_branch
          %308 = sbr.rel (%p306) target = $region24
        $region23: #{tpu_custom_call.1} parent=15 // pred_region
          %s309 = sand.u32 %s23, 1
          %s310 = scalar_lea.sflag [#allocation6], %s309
          %s311 = sand.u32 %s71, 1
          %s312 = scalar_lea.vmem [#allocation5], %s311
          %s314 = ssub.s32 16, 16
          %315 = vsyncadd %s310, %s314
          %s316 = smul.addr %s30, 16
          %s317 = scalar_lea.hbm %s1, %s316
          %s319 = sshll.u32 %s312, 4
          %s320 = int_to_ptr.vmem [resolvable:$true] %s319
          %322 = dma.hbm_to_vmem [thread:$0]  %s317, 16, %s320, %s310
        $region24: #{tpu_custom_call.1} parent=15 // pred_fallthru
          _
        // Predicated region
        $region25: #{tpu_custom_call.1} parent=15 // pred_check
          %p323 = pneg %p107
        $region26: #{tpu_custom_call.1} parent=15 // pred_check_branch
          %325 = sbr.rel (%p323) target = $region28
        $region27: #{tpu_custom_call.1} parent=15 // pred_region
          %p326 = scmp.lt.s32.totalorder %s31, 3
          %s327 = scalar_select %p326, %s31, 3
          %s328 = scalar_lea.vmem %s2, %s327
        $region28: #{tpu_custom_call.1} parent=15 // pred_fallthru
          _
        // Predicated region
        $region29: #{tpu_custom_call.1} parent=15 // pred_check
          %p329 = pneg %p133
        $region30: #{tpu_custom_call.1} parent=15 // pred_check_branch
          %331 = sbr.rel (%p329) target = $region32
        $region31: #{tpu_custom_call.1} parent=15 // pred_region
          %s332 = sand.u32 %s23, 1
          %s333 = scalar_lea.sflag [#allocation6], %s332
          %s334 = sand.u32 %s123, 1
          %s335 = scalar_lea.vmem [#allocation7], %s334
          %s337 = ssub.s32 16, 16
          %338 = vsyncadd %s333, %s337
          %s339 = smul.addr %s31, 16
          %s340 = scalar_lea.hbm %s3, %s339
          %s342 = sshll.u32 %s335, 4
          %s343 = int_to_ptr.vmem [resolvable:$true] %s342
          %345 = dma.hbm_to_vmem [thread:$0]  %s340, 16, %s343, %s333
        $region32: #{tpu_custom_call.1} parent=15 // pred_fallthru
          _
        // Predicated region
        $region33: #{tpu_custom_call.1} parent=15 // pred_check
          %p346 = pneg %p159
        $region34: #{tpu_custom_call.1} parent=15 // pred_check_branch
          %348 = sbr.rel (%p346) target = $region36
        $region35: #{tpu_custom_call.1} parent=15 // pred_region
          %p349 = scmp.lt.s32.totalorder %s31, 3
          %s350 = scalar_select %p349, %s31, 3
          %s351 = smul.addr %s350, 4
          %s352 = smul.addr %s351, 8
          %s353 = scalar_lea.vmem %s4, %s352
        $region36: #{tpu_custom_call.1} parent=15 // pred_fallthru
          _
        // Predicated region
        $region37: #{tpu_custom_call.1} parent=15 // pred_check
          %p354 = pneg %p185
        $region38: #{tpu_custom_call.1} parent=15 // pred_check_branch
          %356 = sbr.rel (%p354) target = $region40
        $region39: #{tpu_custom_call.1} parent=15 // pred_region
          %p357 = scmp.lt.s32.totalorder %s31, 3
          %s358 = scalar_select %p357, %s31, 3
          %s359 = smul.addr %s358, 4
          %s360 = smul.addr %s359, 8
          %s361 = scalar_lea.vmem %s5, %s360
        $region40: #{tpu_custom_call.1} parent=15 // pred_fallthru
          _
        // Predicated region
        $region41: #{tpu_custom_call.1} parent=15 // pred_check
          %p362 = pneg %p211
        $region42: #{tpu_custom_call.1} parent=15 // pred_check_branch
          %364 = sbr.rel (%p362) target = $region44
        $region43: #{tpu_custom_call.1} parent=15 // pred_region
          %p365 = scmp.lt.s32.totalorder %s31, 3
          %s366 = scalar_select %p365, %s31, 3
          %s367 = smul.addr %s366, 4
          %s368 = smul.addr %s367, 8
          %s369 = scalar_lea.vmem %s6, %s368
        $region44: #{tpu_custom_call.1} parent=15 // pred_fallthru
          _
        // Predicated region
        $region45: #{tpu_custom_call.1} parent=15 // pred_check
          %p370 = pneg %p237
        $region46: #{tpu_custom_call.1} parent=15 // pred_check_branch
          %372 = sbr.rel (%p370) target = $region48
        $region47: #{tpu_custom_call.1} parent=15 // pred_region
          %p373 = scmp.lt.s32.totalorder %s31, 3
          %s374 = scalar_select %p373, %s31, 3
          %s375 = smul.addr %s374, 8
          %s376 = smul.addr %s375, 8
          %s377 = scalar_lea.vmem %s7, %s376
        $region48: #{tpu_custom_call.1} parent=15 // pred_fallthru
          _
      $region16: #{tpu_custom_call.1} parent=5 // pred_fallthru
        _
      %p378 = scmp.le.s32.totalorder 1, %s23
      %p379 = scmp.lt.s32.totalorder %s23, 9
      %p380 = pnand %p378, %p379
      %p381 = pneg %p380
      // Predicated region
      $region49: #{tpu_custom_call.1} parent=5 // pred_check
        _
      $region50: #{tpu_custom_call.1} parent=5 // pred_check_branch
        %383 = sbr.rel (%p380) target = $region52
      $region51: #{tpu_custom_call.1} parent=5 // pred_region
        %s384 = ssub.s32 %s23, 1
        %s385 = sand.u32 %s48, 1
        %s386 = scalar_lea.sflag [#allocation3], %s385
        %s387 = sand.u32 %s48, 1
        %s388 = smul.addr %s387, 8
        %s389 = scalar_lea.vmem [#allocation2], %s388
        // Predicated region
        $region53: #{tpu_custom_call.1} parent=51 // pred_check
          %p390 = pneg %p61
        $region54: #{tpu_custom_call.1} parent=51 // pred_check_branch
          %392 = sbr.rel (%p390) target = $region56
        $region55: #{tpu_custom_call.1} parent=51 // pred_region
          %393 = dma.done %s386, 128
        $region56: #{tpu_custom_call.1} parent=51 // pred_fallthru
          _
        %s394 = sand.u32 %s28, 1
        %s395 = scalar_lea.sflag [#allocation6], %s394
        %s396 = sand.u32 %s74, 1
        %s397 = scalar_lea.vmem [#allocation5], %s396
        // Predicated region
        $region57: #{tpu_custom_call.1} parent=51 // pred_check
          %p398 = pneg %p87
        $region58: #{tpu_custom_call.1} parent=51 // pred_check_branch
          %400 = sbr.rel (%p398) target = $region60
        $region59: #{tpu_custom_call.1} parent=51 // pred_region
          %401 = dma.done %s395, 16
        $region60: #{tpu_custom_call.1} parent=51 // pred_fallthru
          _
        %s402 = sand.u32 %s28, 1
        %s403 = scalar_lea.sflag [#allocation6], %s402
        %s404 = sand.u32 %s126, 1
        %s405 = scalar_lea.vmem [#allocation7], %s404
        // Predicated region
        $region61: #{tpu_custom_call.1} parent=51 // pred_check
          %p406 = pneg %p139
        $region62: #{tpu_custom_call.1} parent=51 // pred_check_branch
          %408 = sbr.rel (%p406) target = $region64
        $region63: #{tpu_custom_call.1} parent=51 // pred_region
          %409 = dma.done %s403, 16
        $region64: #{tpu_custom_call.1} parent=51 // pred_fallthru
          _
        %s410 = sand.u32 %s48, 1
        %s411 = scalar_lea.sflag [#allocation3], %s410
        %s412 = sand.u32 %s48, 1
        %s413 = smul.addr %s412, 8
        %s414 = scalar_lea.vmem [#allocation2], %s413
        %p415 = pneg %p61
        %p416 = pneg %p58
        %s417 = sand.u32 %s28, 1
        %s418 = scalar_lea.sflag [#allocation6], %s417
        %s419 = sand.u32 %s74, 1
        %s420 = scalar_lea.vmem [#allocation5], %s419
        %p421 = pneg %p87
        %p422 = pneg %p84
        %p423 = scmp.lt.s32.totalorder %s33, 3
        %s424 = scalar_select %p423, %s33, 3
        %s425 = scalar_lea.vmem %s2, %s424
        %p426 = pneg %p113
        %p427 = pneg %p110
        %s428 = sand.u32 %s28, 1
        %s429 = scalar_lea.sflag [#allocation6], %s428
        %s430 = sand.u32 %s126, 1
        %s431 = scalar_lea.vmem [#allocation7], %s430
        %p432 = pneg %p139
        %p433 = pneg %p136
        %p434 = scmp.lt.s32.totalorder %s33, 3
        %s435 = scalar_select %p434, %s33, 3
        %s436 = smul.addr %s435, 4
        %s437 = smul.addr %s436, 8
        %s438 = scalar_lea.vmem %s4, %s437
        %p439 = pneg %p165
        %p440 = pneg %p162
        %p441 = scmp.lt.s32.totalorder %s33, 3
        %s442 = scalar_select %p441, %s33, 3
        %s443 = smul.addr %s442, 4
        %s444 = smul.addr %s443, 8
        %s445 = scalar_lea.vmem %s5, %s444
        %p446 = pneg %p191
        %p447 = pneg %p188
        %p448 = scmp.lt.s32.totalorder %s33, 3
        %s449 = scalar_select %p448, %s33, 3
        %s450 = smul.addr %s449, 4
        %s451 = smul.addr %s450, 8
        %s452 = scalar_lea.vmem %s6, %s451
        %p453 = pneg %p217
        %p454 = pneg %p214
        %p455 = scmp.lt.s32.totalorder %s33, 3
        %s456 = scalar_select %p455, %s33, 3
        %s457 = smul.addr %s456, 8
        %s458 = smul.addr %s457, 8
        %s459 = scalar_lea.vmem %s7, %s458
        %p460 = pneg %p243
        %p461 = pneg %p240
        %p462 = pneg %p269
        %p463 = pneg %p266
        %s464 = sand.u32 %s256, 1
        %s465 = scalar_lea.sflag [#allocation4], %s464
        %s466 = sand.u32 %s256, 1
        %s467 = smul.addr %s466, 8
        %s468 = scalar_lea.vmem [#allocation8], %s467
        %p469 = scmp.lt.s32.totalorder %s33, 3
        %s470 = scalar_select %p469, %s33, 3
        %s471 = scalar_lea.vmem %s2, %s470
        %p472 = scmp.lt.s32.totalorder %s33, 3
        %s473 = scalar_select %p472, %s33, 3
        %s474 = smul.addr %s473, 4
        %s475 = smul.addr %s474, 8
        %s476 = scalar_lea.vmem %s4, %s475
        %p477 = scmp.lt.s32.totalorder %s33, 3
        %s478 = scalar_select %p477, %s33, 3
        %s479 = smul.addr %s478, 4
        %s480 = smul.addr %s479, 8
        %s481 = scalar_lea.vmem %s5, %s480
        %p482 = scmp.lt.s32.totalorder %s33, 3
        %s483 = scalar_select %p482, %s33, 3
        %s484 = smul.addr %s483, 4
        %s485 = smul.addr %s484, 8
        %s486 = scalar_lea.vmem %s6, %s485
        %p487 = scmp.lt.s32.totalorder %s33, 3
        %s488 = scalar_select %p487, %s33, 3
        %s489 = smul.addr %s488, 8
        %s490 = smul.addr %s489, 8
        %s491 = scalar_lea.vmem %s7, %s490
        %p492 = scmp.eq.s32.totalorder %s33, 0
        // Predicated region
        $region65: #{tpu_custom_call.1} parent=51 // pred_check
          %p493 = pneg %p492
        $region66: #{tpu_custom_call.1} parent=51 // pred_check_branch
          %495 = sbr.rel (%p493) target = $region68
        $region67: #{tpu_custom_call.1} parent=51 // pred_region
          %v496 = vld [vmem:[%s389] sm:$0xff]
          %vm497 = vcmask 261120
          %498 = vst.msk [vmem:[%s468] sm:$0xff] %vm497, %v496
        $region68: #{tpu_custom_call.1} parent=51 // pred_fallthru
          _
        %v499 = vld [vmem:[%s468] sm:$0xff]
        %v500 = vld [vmem:[%s397] sm:$0x1]
        %v501 = vld [vmem:[%s471] sm:$0x1]
        %v502 = vld [vmem:[%s405] sm:$0x1]
        %v503 = vld [vmem:[%s476] sm:$0xff]
        %v504 = vld [vmem:[%s476 + $0x8] sm:$0xff]
        %v505 = vld [vmem:[%s476 + $0x10] sm:$0xff]
        %v506 = vld [vmem:[%s476 + $0x18] sm:$0xff]
        %v507 = vld [vmem:[%s481] sm:$0xff]
        %v508 = vld [vmem:[%s481 + $0x8] sm:$0xff]
        %v509 = vld [vmem:[%s481 + $0x10] sm:$0xff]
        %v510 = vld [vmem:[%s481 + $0x18] sm:$0xff]
        %v511 = vld [vmem:[%s486] sm:$0xff]
        %v512 = vld [vmem:[%s486 + $0x8] sm:$0xff]
        %v513 = vld [vmem:[%s486 + $0x10] sm:$0xff]
        %v514 = vld [vmem:[%s486 + $0x18] sm:$0xff]
        %v515 = vld [vmem:[%s491] sm:$0xff]
        %v516 = vld [vmem:[%s491 + $0x8] sm:$0xff]
        %v517 = vld [vmem:[%s491 + $0x10] sm:$0xff]
        %v518 = vld [vmem:[%s491 + $0x18] sm:$0xff]
        %v519 = vld [vmem:[%s491 + $0x20] sm:$0xff]
        %v520 = vld [vmem:[%s491 + $0x28] sm:$0xff]
        %v521 = vld [vmem:[%s491 + $0x30] sm:$0xff]
        %v522 = vld [vmem:[%s491 + $0x38] sm:$0xff]
        %vm523 = vcmp.le.f32.partialorder %v500, 0.5
        %vm524 = vcmask 261120
        %v525 = vsel %vm524, %v499, 0.0
        %526 = vadd.xlane.f32.xlu0 %v525
        %v527 = vpop.xlane.xlu0 %526
        %v528 = vrcp.pop 32.0
        %v529 = vmul.f32 %v527, %v528
        %v530 = vsub.f32 %v499, %v529
        %v531 = vmul.f32 %v530, %v530
        %v532 = vsel %vm524, %v531, 0.0
        %533 = vadd.xlane.f32.xlu0 %v532
        %v534 = vpop.xlane.xlu0 %533
        %v535 = vmul.f32 %v534, %v528
        %v536 = vadd.f32 %v535, 1e-05
        %v537 = vrsqrt.pop %v536
        %v538 = vmul.f32 %v530, %v537
        %v540 = vlaneseq
        %v541 = vshrl.u32 %v540, 7
        %v542 = vsub.s32 0, %v541
        %v543 = vrot.slane %v501, %v542
        %v545 = vmul.f32 %v538, %v543
        %v547 = vlaneseq
        %v548 = vshrl.u32 %v547, 7
        %v549 = vsub.s32 0, %v548
        %v550 = vrot.slane %v502, %v549
        %v552 = vadd.f32 %v545, %v550
        %v554 = vsel %vm524, %v552, 0
        %556 = vmatprep.subr.mxu0 0.0
        %557 = vmatpush1.msra.mxu0 %v503
        %558 = vmatprep.subr.mxu0 0.0
        %559 = vmatpush1.msra.mxu0 %v504
        %560 = vmatprep.subr.mxu0 0.0
        %561 = vmatpush1.msra.mxu0 %v505
        %562 = vmatprep.subr.mxu0 0.0
        %563 = vmatpush1.msra.mxu0 %v506
        %564 = vmatprep.subr.mxu0 0.0
        %565 = vmatpush1.msra.mxu0 0.0
        %566 = vmatprep.subr.mxu0 0.0
        %567 = vmatpush1.msra.mxu0 0.0
        %568 = vmatprep.subr.mxu0 0.0
        %569 = vmatpush1.msra.mxu0 0.0
        %570 = vmatprep.subr.mxu0 0.0
        %571 = vmatpush1.msra.mxu0 0.0
        %572 = vmatprep.subr.mxu0 0.0
        %573 = vmatpush1.msra.mxu0 0.0
        %574 = vmatprep.subr.mxu0 0.0
        %575 = vmatpush1.msra.mxu0 0.0
        %576 = vmatprep.subr.mxu0 0.0
        %577 = vmatpush1.msra.mxu0 0.0
        %578 = vmatprep.subr.mxu0 0.0
        %579 = vmatpush1.msra.mxu0 0.0
        %580 = vmatprep.subr.mxu0 0.0
        %581 = vmatpush1.msra.mxu0 0.0
        %582 = vmatprep.subr.mxu0 0.0
        %583 = vmatpush1.msra.mxu0 0.0
        %584 = vmatprep.subr.mxu0 0.0
        %585 = vmatpush1.msra.mxu0 0.0
        %586 = vmatprep.subr.mxu0 0.0
        %587 = vmatpush1.msra.mxu0 0.0
        %588 = vmatprep.subr.mxu0 0.0
        %589 = vmatpush1.msra.mxu0 0.0
        %590 = vmatprep.subr.mxu0 0.0
        %591 = vmatpush1.msra.mxu0 0.0
        %592 = vmatprep.subr.mxu0 0.0
        %593 = vmatpush1.msra.mxu0 0.0
        %594 = vmatprep.subr.mxu0 0.0
        %595 = vmatpush1.msra.mxu0 0.0
        %596 = vmatprep.subr.mxu0 0.0
        %597 = vmatpush1.msra.mxu0 0.0
        %598 = vmatprep.subr.mxu0 0.0
        %599 = vmatpush1.msra.mxu0 0.0
        %600 = vmatprep.subr.mxu0 0.0
        %601 = vmatpush1.msra.mxu0 0.0
        %602 = vmatprep.subr.mxu0 0.0
        %603 = vmatpush1.msra.mxu0 0.0
        %604 = vmatprep.subr.mxu0 0.0
        %605 = vmatpush1.msra.mxu0 0.0
        %606 = vmatprep.subr.mxu0 0.0
        %607 = vmatpush1.msra.mxu0 0.0
        %608 = vmatprep.subr.mxu0 0.0
        %609 = vmatpush1.msra.mxu0 0.0
        %610 = vmatprep.subr.mxu0 0.0
        %611 = vmatpush1.msra.mxu0 0.0
        %612 = vmatprep.subr.mxu0 0.0
        %613 = vmatpush1.msra.mxu0 0.0
        %614 = vmatprep.subr.mxu0 0.0
        %615 = vmatpush1.msra.mxu0 0.0
        %616 = vmatprep.subr.mxu0 0.0
        %617 = vmatpush1.msra.mxu0 0.0
        %618 = vmatprep.subr.mxu0 0.0
        %619 = vmatpush1.msra.mxu0 0.0
        %620 = vmatprep.mubr.f32.mxu0 0.0
        %621 = vmatmul.mubr.f32.gmra.mrb[0].mxu0 %v554
        %v622 = vpop.f32.mrb[0].mxu0
        %v623 = vadd.f32 0.0, %v622
        %v624 = vpop.f32.mrb[0].mxu0
        %625 = vdwg.mxu0
        %627 = vrot.lane.b32.xlu0 %v623, 96
        %v628 = vpop.permute.xlu0 %627
        %vm629 = vcmask 130048
        %v630 = vsel %vm629, %v623, 0
        %v632 = vsel %vm629, %v628, 0
        %634 = vmatprep.subr.mxu0 0.0
        %635 = vmatpush1.xpose.msra.mxu0 %v632
        %636 = vmatprep.subr.mxu0 0.0
        %637 = vmatpush1.xpose.msra.mxu0 0.0
        %638 = vmatprep.subr.mxu0 0.0
        %639 = vmatpush1.xpose.msra.mxu0 0.0
        %640 = vmatprep.subr.mxu0 0.0
        %641 = vmatpush1.xpose.msra.mxu0 0.0
        %642 = vmatprep.subr.mxu0 0.0
        %643 = vmatpush1.xpose.msra.mxu0 0.0
        %644 = vmatprep.subr.mxu0 0.0
        %645 = vmatpush1.xpose.msra.mxu0 0.0
        %646 = vmatprep.subr.mxu0 0.0
        %647 = vmatpush1.xpose.msra.mxu0 0.0
        %648 = vmatprep.subr.mxu0 0.0
        %649 = vmatpush1.xpose.msra.mxu0 0.0
        %650 = vmatprep.subr.mxu0 0.0
        %651 = vmatpush1.xpose.msra.mxu0 0.0
        %652 = vmatprep.subr.mxu0 0.0
        %653 = vmatpush1.xpose.msra.mxu0 0.0
        %654 = vmatprep.subr.mxu0 0.0
        %655 = vmatpush1.xpose.msra.mxu0 0.0
        %656 = vmatprep.subr.mxu0 0.0
        %657 = vmatpush1.xpose.msra.mxu0 0.0
        %658 = vmatprep.subr.mxu0 0.0
        %659 = vmatpush1.xpose.msra.mxu0 0.0
        %660 = vmatprep.subr.mxu0 0.0
        %661 = vmatpush1.xpose.msra.mxu0 0.0
        %662 = vmatprep.subr.mxu0 0.0
        %663 = vmatpush1.xpose.msra.mxu0 0.0
        %664 = vmatprep.subr.mxu0 0.0
        %665 = vmatpush1.xpose.msra.mxu0 0.0
        %666 = vmatprep.subr.mxu0 0.0
        %667 = vmatpush1.xpose.msra.mxu0 0.0
        %668 = vmatprep.subr.mxu0 0.0
        %669 = vmatpush1.xpose.msra.mxu0 0.0
        %670 = vmatprep.subr.mxu0 0.0
        %671 = vmatpush1.xpose.msra.mxu0 0.0
        %672 = vmatprep.subr.mxu0 0.0
        %673 = vmatpush1.xpose.msra.mxu0 0.0
        %674 = vmatprep.subr.mxu0 0.0
        %675 = vmatpush1.xpose.msra.mxu0 0.0
        %676 = vmatprep.subr.mxu0 0.0
        %677 = vmatpush1.xpose.msra.mxu0 0.0
        %678 = vmatprep.subr.mxu0 0.0
        %679 = vmatpush1.xpose.msra.mxu0 0.0
        %680 = vmatprep.subr.mxu0 0.0
        %681 = vmatpush1.xpose.msra.mxu0 0.0
        %682 = vmatprep.subr.mxu0 0.0
        %683 = vmatpush1.xpose.msra.mxu0 0.0
        %684 = vmatprep.subr.mxu0 0.0
        %685 = vmatpush1.xpose.msra.mxu0 0.0
        %686 = vmatprep.subr.mxu0 0.0
        %687 = vmatpush1.xpose.msra.mxu0 0.0
        %688 = vmatprep.subr.mxu0 0.0
        %689 = vmatpush1.xpose.msra.mxu0 0.0
        %690 = vmatprep.subr.mxu0 0.0
        %691 = vmatpush1.xpose.msra.mxu0 0.0
        %692 = vmatprep.subr.mxu0 0.0
        %693 = vmatpush1.xpose.msra.mxu0 0.0
        %694 = vmatprep.subr.mxu0 0.0
        %695 = vmatpush1.xpose.msra.mxu0 0.0
        %696 = vmatprep.subr.mxu0 0.0
        %697 = vmatpush1.xpose.msra.mxu0 0.0
        %698 = vmatprep.mubr.f32.mxu0 0.0
        %699 = vmatmul.mubr.f32.gmra.mrb[0].mxu0 %v630
        %v700 = vpop.f32.mrb[0].mxu0
        %v701 = vadd.f32 0.0, %v700
        %v702 = vpop.f32.mrb[0].mxu0
        %703 = vdwg.mxu0
        %v704 = vsel %vm523, 1, 0
        %v705 = vlaneseq
        %v706 = vshrl.u32 %v705, 7
        %v707 = vsub.s32 0, %v706
        %v708 = vrot.slane %v704, %v707
        %vm709 = vcmp.eq.s32.totalorder %v708, 1
        %v710 = vsel %vm709, -1e+30, %v701
        %vm711 = vcmask 64512
        %v712 = vsel %vm711, %v710, -inf
        %713 = vmax.xlane.f32.xlu0 %v712
        %v714 = vpop.xlane.xlu0 %713
        %v715 = vsub.f32 %v710, %v714
        %v716 = vmul.f32 %v715, 1.442695
        %v717 = vpow.pop %v716
        %v718 = vsel %vm711, %v717, 0.0
        %719 = vadd.xlane.f32.xlu0 %v718
        %v720 = vpop.xlane.xlu0 %719
        %v721 = vrcp.pop %v720
        %v722 = vmul.f32 %v717, %v721
        %723 = vrot.lane.b32.xlu0 %v623, 64
        %v724 = vpop.permute.xlu0 %723
        %v727 = vsel %vm711, %v722, 0
        %729 = vmatprep.subr.mxu0 0.0
        %730 = vmatpush1.msra.mxu0 %v724
        %731 = vmatprep.subr.mxu0 0.0
        %732 = vmatpush1.msra.mxu0 0.0
        %733 = vmatprep.subr.mxu0 0.0
        %734 = vmatpush1.msra.mxu0 0.0
        %735 = vmatprep.subr.mxu0 0.0
        %736 = vmatpush1.msra.mxu0 0.0
        %737 = vmatprep.subr.mxu0 0.0
        %738 = vmatpush1.msra.mxu0 0.0
        %739 = vmatprep.subr.mxu0 0.0
        %740 = vmatpush1.msra.mxu0 0.0
        %741 = vmatprep.subr.mxu0 0.0
        %742 = vmatpush1.msra.mxu0 0.0
        %743 = vmatprep.subr.mxu0 0.0
        %744 = vmatpush1.msra.mxu0 0.0
        %745 = vmatprep.subr.mxu0 0.0
        %746 = vmatpush1.msra.mxu0 0.0
        %747 = vmatprep.subr.mxu0 0.0
        %748 = vmatpush1.msra.mxu0 0.0
        %749 = vmatprep.subr.mxu0 0.0
        %750 = vmatpush1.msra.mxu0 0.0
        %751 = vmatprep.subr.mxu0 0.0
        %752 = vmatpush1.msra.mxu0 0.0
        %753 = vmatprep.subr.mxu0 0.0
        %754 = vmatpush1.msra.mxu0 0.0
        %755 = vmatprep.subr.mxu0 0.0
        %756 = vmatpush1.msra.mxu0 0.0
        %757 = vmatprep.subr.mxu0 0.0
        %758 = vmatpush1.msra.mxu0 0.0
        %759 = vmatprep.subr.mxu0 0.0
        %760 = vmatpush1.msra.mxu0 0.0
        %761 = vmatprep.subr.mxu0 0.0
        %762 = vmatpush1.msra.mxu0 0.0
        %763 = vmatprep.subr.mxu0 0.0
        %764 = vmatpush1.msra.mxu0 0.0
        %765 = vmatprep.subr.mxu0 0.0
        %766 = vmatpush1.msra.mxu0 0.0
        %767 = vmatprep.subr.mxu0 0.0
        %768 = vmatpush1.msra.mxu0 0.0
        %769 = vmatprep.subr.mxu0 0.0
        %770 = vmatpush1.msra.mxu0 0.0
        %771 = vmatprep.subr.mxu0 0.0
        %772 = vmatpush1.msra.mxu0 0.0
        %773 = vmatprep.subr.mxu0 0.0
        %774 = vmatpush1.msra.mxu0 0.0
        %775 = vmatprep.subr.mxu0 0.0
        %776 = vmatpush1.msra.mxu0 0.0
        %777 = vmatprep.subr.mxu0 0.0
        %778 = vmatpush1.msra.mxu0 0.0
        %779 = vmatprep.subr.mxu0 0.0
        %780 = vmatpush1.msra.mxu0 0.0
        %781 = vmatprep.subr.mxu0 0.0
        %782 = vmatpush1.msra.mxu0 0.0
        %783 = vmatprep.subr.mxu0 0.0
        %784 = vmatpush1.msra.mxu0 0.0
        %785 = vmatprep.subr.mxu0 0.0
        %786 = vmatpush1.msra.mxu0 0.0
        %787 = vmatprep.subr.mxu0 0.0
        %788 = vmatpush1.msra.mxu0 0.0
        %789 = vmatprep.subr.mxu0 0.0
        %790 = vmatpush1.msra.mxu0 0.0
        %791 = vmatprep.subr.mxu0 0.0
        %792 = vmatpush1.msra.mxu0 0.0
        %793 = vmatprep.mubr.f32.mxu0 0.0
        %794 = vmatmul.mubr.f32.gmra.mrb[0].mxu0 %v727
        %v795 = vpop.f32.mrb[0].mxu0
        %v796 = vadd.f32 0.0, %v795
        %v797 = vpop.f32.mrb[0].mxu0
        %798 = vdwg.mxu0
        %799 = vrot.lane.b32.xlu0 %v623, 112
        %v800 = vpop.permute.xlu0 %799
        %801 = vrot.lane.b32.xlu0 %v623, 80
        %v802 = vpop.permute.xlu0 %801
        %v803 = vsel %vm629, %v800, 0
        %v805 = vsel %vm629, %v802, 0
        %807 = vmatprep.subr.mxu0 0.0
        %808 = vmatpush1.xpose.msra.mxu0 %v805
        %809 = vmatprep.subr.mxu0 0.0
        %810 = vmatpush1.xpose.msra.mxu0 0.0
        %811 = vmatprep.subr.mxu0 0.0
        %812 = vmatpush1.xpose.msra.mxu0 0.0
        %813 = vmatprep.subr.mxu0 0.0
        %814 = vmatpush1.xpose.msra.mxu0 0.0
        %815 = vmatprep.subr.mxu0 0.0
        %816 = vmatpush1.xpose.msra.mxu0 0.0
        %817 = vmatprep.subr.mxu0 0.0
        %818 = vmatpush1.xpose.msra.mxu0 0.0
        %819 = vmatprep.subr.mxu0 0.0
        %820 = vmatpush1.xpose.msra.mxu0 0.0
        %821 = vmatprep.subr.mxu0 0.0
        %822 = vmatpush1.xpose.msra.mxu0 0.0
        %823 = vmatprep.subr.mxu0 0.0
        %824 = vmatpush1.xpose.msra.mxu0 0.0
        %825 = vmatprep.subr.mxu0 0.0
        %826 = vmatpush1.xpose.msra.mxu0 0.0
        %827 = vmatprep.subr.mxu0 0.0
        %828 = vmatpush1.xpose.msra.mxu0 0.0
        %829 = vmatprep.subr.mxu0 0.0
        %830 = vmatpush1.xpose.msra.mxu0 0.0
        %831 = vmatprep.subr.mxu0 0.0
        %832 = vmatpush1.xpose.msra.mxu0 0.0
        %833 = vmatprep.subr.mxu0 0.0
        %834 = vmatpush1.xpose.msra.mxu0 0.0
        %835 = vmatprep.subr.mxu0 0.0
        %836 = vmatpush1.xpose.msra.mxu0 0.0
        %837 = vmatprep.subr.mxu0 0.0
        %838 = vmatpush1.xpose.msra.mxu0 0.0
        %839 = vmatprep.subr.mxu0 0.0
        %840 = vmatpush1.xpose.msra.mxu0 0.0
        %841 = vmatprep.subr.mxu0 0.0
        %842 = vmatpush1.xpose.msra.mxu0 0.0
        %843 = vmatprep.subr.mxu0 0.0
        %844 = vmatpush1.xpose.msra.mxu0 0.0
        %845 = vmatprep.subr.mxu0 0.0
        %846 = vmatpush1.xpose.msra.mxu0 0.0
        %847 = vmatprep.subr.mxu0 0.0
        %848 = vmatpush1.xpose.msra.mxu0 0.0
        %849 = vmatprep.subr.mxu0 0.0
        %850 = vmatpush1.xpose.msra.mxu0 0.0
        %851 = vmatprep.subr.mxu0 0.0
        %852 = vmatpush1.xpose.msra.mxu0 0.0
        %853 = vmatprep.subr.mxu0 0.0
        %854 = vmatpush1.xpose.msra.mxu0 0.0
        %855 = vmatprep.subr.mxu0 0.0
        %856 = vmatpush1.xpose.msra.mxu0 0.0
        %857 = vmatprep.subr.mxu0 0.0
        %858 = vmatpush1.xpose.msra.mxu0 0.0
        %859 = vmatprep.subr.mxu0 0.0
        %860 = vmatpush1.xpose.msra.mxu0 0.0
        %861 = vmatprep.subr.mxu0 0.0
        %862 = vmatpush1.xpose.msra.mxu0 0.0
        %863 = vmatprep.subr.mxu0 0.0
        %864 = vmatpush1.xpose.msra.mxu0 0.0
        %865 = vmatprep.subr.mxu0 0.0
        %866 = vmatpush1.xpose.msra.mxu0 0.0
        %867 = vmatprep.subr.mxu0 0.0
        %868 = vmatpush1.xpose.msra.mxu0 0.0
        %869 = vmatprep.subr.mxu0 0.0
        %870 = vmatpush1.xpose.msra.mxu0 0.0
        %871 = vmatprep.mubr.f32.mxu0 0.0
        %872 = vmatmul.mubr.f32.gmra.mrb[0].mxu0 %v803
        %v873 = vpop.f32.mrb[0].mxu0
        %v874 = vadd.f32 0.0, %v873
        %v875 = vpop.f32.mrb[0].mxu0
        %876 = vdwg.mxu0
        %v877 = vsel %vm709, -1e+30, %v874
        %v878 = vsel %vm711, %v877, -inf
        %879 = vmax.xlane.f32.xlu0 %v878
        %v880 = vpop.xlane.xlu0 %879
        %v881 = vsub.f32 %v877, %v880
        %v882 = vmul.f32 %v881, 1.442695
        %v883 = vpow.pop %v882
        %v884 = vsel %vm711, %v883, 0.0
        %885 = vadd.xlane.f32.xlu0 %v884
        %v886 = vpop.xlane.xlu0 %885
        %v887 = vrcp.pop %v886
        %v888 = vmul.f32 %v883, %v887
        %889 = vrot.lane.b32.xlu0 %v623, 48
        %v890 = vpop.permute.xlu0 %889
        %v893 = vsel %vm711, %v888, 0
        %895 = vmatprep.subr.mxu0 0.0
        %896 = vmatpush1.msra.mxu0 %v890
        %897 = vmatprep.subr.mxu0 0.0
        %898 = vmatpush1.msra.mxu0 0.0
        %899 = vmatprep.subr.mxu0 0.0
        %900 = vmatpush1.msra.mxu0 0.0
        %901 = vmatprep.subr.mxu0 0.0
        %902 = vmatpush1.msra.mxu0 0.0
        %903 = vmatprep.subr.mxu0 0.0
        %904 = vmatpush1.msra.mxu0 0.0
        %905 = vmatprep.subr.mxu0 0.0
        %906 = vmatpush1.msra.mxu0 0.0
        %907 = vmatprep.subr.mxu0 0.0
        %908 = vmatpush1.msra.mxu0 0.0
        %909 = vmatprep.subr.mxu0 0.0
        %910 = vmatpush1.msra.mxu0 0.0
        %911 = vmatprep.subr.mxu0 0.0
        %912 = vmatpush1.msra.mxu0 0.0
        %913 = vmatprep.subr.mxu0 0.0
        %914 = vmatpush1.msra.mxu0 0.0
        %915 = vmatprep.subr.mxu0 0.0
        %916 = vmatpush1.msra.mxu0 0.0
        %917 = vmatprep.subr.mxu0 0.0
        %918 = vmatpush1.msra.mxu0 0.0
        %919 = vmatprep.subr.mxu0 0.0
        %920 = vmatpush1.msra.mxu0 0.0
        %921 = vmatprep.subr.mxu0 0.0
        %922 = vmatpush1.msra.mxu0 0.0
        %923 = vmatprep.subr.mxu0 0.0
        %924 = vmatpush1.msra.mxu0 0.0
        %925 = vmatprep.subr.mxu0 0.0
        %926 = vmatpush1.msra.mxu0 0.0
        %927 = vmatprep.subr.mxu0 0.0
        %928 = vmatpush1.msra.mxu0 0.0
        %929 = vmatprep.subr.mxu0 0.0
        %930 = vmatpush1.msra.mxu0 0.0
        %931 = vmatprep.subr.mxu0 0.0
        %932 = vmatpush1.msra.mxu0 0.0
        %933 = vmatprep.subr.mxu0 0.0
        %934 = vmatpush1.msra.mxu0 0.0
        %935 = vmatprep.subr.mxu0 0.0
        %936 = vmatpush1.msra.mxu0 0.0
        %937 = vmatprep.subr.mxu0 0.0
        %938 = vmatpush1.msra.mxu0 0.0
        %939 = vmatprep.subr.mxu0 0.0
        %940 = vmatpush1.msra.mxu0 0.0
        %941 = vmatprep.subr.mxu0 0.0
        %942 = vmatpush1.msra.mxu0 0.0
        %943 = vmatprep.subr.mxu0 0.0
        %944 = vmatpush1.msra.mxu0 0.0
        %945 = vmatprep.subr.mxu0 0.0
        %946 = vmatpush1.msra.mxu0 0.0
        %947 = vmatprep.subr.mxu0 0.0
        %948 = vmatpush1.msra.mxu0 0.0
        %949 = vmatprep.subr.mxu0 0.0
        %950 = vmatpush1.msra.mxu0 0.0
        %951 = vmatprep.subr.mxu0 0.0
        %952 = vmatpush1.msra.mxu0 0.0
        %953 = vmatprep.subr.mxu0 0.0
        %954 = vmatpush1.msra.mxu0 0.0
        %955 = vmatprep.subr.mxu0 0.0
        %956 = vmatpush1.msra.mxu0 0.0
        %957 = vmatprep.subr.mxu0 0.0
        %958 = vmatpush1.msra.mxu0 0.0
        %959 = vmatprep.mubr.f32.mxu0 0.0
        %960 = vmatmul.mubr.f32.gmra.mrb[0].mxu0 %v893
        %v961 = vpop.f32.mrb[0].mxu0
        %v962 = vadd.f32 0.0, %v961
        %v963 = vpop.f32.mrb[0].mxu0
        %964 = vdwg.mxu0
        %966 = vrot.lane.b32.xlu0 %v962, 16
        %v967 = vpop.permute.xlu0 %966
        %v969 = vsel %vm629, %v796, %v967
        %v971 = vsel %vm524, %v969, 0
        %973 = vmatprep.subr.mxu0 0.0
        %974 = vmatpush1.msra.mxu0 %v507
        %975 = vmatprep.subr.mxu0 0.0
        %976 = vmatpush1.msra.mxu0 %v508
        %977 = vmatprep.subr.mxu0 0.0
        %978 = vmatpush1.msra.mxu0 %v509
        %979 = vmatprep.subr.mxu0 0.0
        %980 = vmatpush1.msra.mxu0 %v510
        %981 = vmatprep.subr.mxu0 0.0
        %982 = vmatpush1.msra.mxu0 0.0
        %983 = vmatprep.subr.mxu0 0.0
        %984 = vmatpush1.msra.mxu0 0.0
        %985 = vmatprep.subr.mxu0 0.0
        %986 = vmatpush1.msra.mxu0 0.0
        %987 = vmatprep.subr.mxu0 0.0
        %988 = vmatpush1.msra.mxu0 0.0
        %989 = vmatprep.subr.mxu0 0.0
        %990 = vmatpush1.msra.mxu0 0.0
        %991 = vmatprep.subr.mxu0 0.0
        %992 = vmatpush1.msra.mxu0 0.0
        %993 = vmatprep.subr.mxu0 0.0
        %994 = vmatpush1.msra.mxu0 0.0
        %995 = vmatprep.subr.mxu0 0.0
        %996 = vmatpush1.msra.mxu0 0.0
        %997 = vmatprep.subr.mxu0 0.0
        %998 = vmatpush1.msra.mxu0 0.0
        %999 = vmatprep.subr.mxu0 0.0
        %1000 = vmatpush1.msra.mxu0 0.0
        %1001 = vmatprep.subr.mxu0 0.0
        %1002 = vmatpush1.msra.mxu0 0.0
        %1003 = vmatprep.subr.mxu0 0.0
        %1004 = vmatpush1.msra.mxu0 0.0
        %1005 = vmatprep.subr.mxu0 0.0
        %1006 = vmatpush1.msra.mxu0 0.0
        %1007 = vmatprep.subr.mxu0 0.0
        %1008 = vmatpush1.msra.mxu0 0.0
        %1009 = vmatprep.subr.mxu0 0.0
        %1010 = vmatpush1.msra.mxu0 0.0
        %1011 = vmatprep.subr.mxu0 0.0
        %1012 = vmatpush1.msra.mxu0 0.0
        %1013 = vmatprep.subr.mxu0 0.0
        %1014 = vmatpush1.msra.mxu0 0.0
        %1015 = vmatprep.subr.mxu0 0.0
        %1016 = vmatpush1.msra.mxu0 0.0
        %1017 = vmatprep.subr.mxu0 0.0
        %1018 = vmatpush1.msra.mxu0 0.0
        %1019 = vmatprep.subr.mxu0 0.0
        %1020 = vmatpush1.msra.mxu0 0.0
        %1021 = vmatprep.subr.mxu0 0.0
        %1022 = vmatpush1.msra.mxu0 0.0
        %1023 = vmatprep.subr.mxu0 0.0
        %1024 = vmatpush1.msra.mxu0 0.0
        %1025 = vmatprep.subr.mxu0 0.0
        %1026 = vmatpush1.msra.mxu0 0.0
        %1027 = vmatprep.subr.mxu0 0.0
        %1028 = vmatpush1.msra.mxu0 0.0
        %1029 = vmatprep.subr.mxu0 0.0
        %1030 = vmatpush1.msra.mxu0 0.0
        %1031 = vmatprep.subr.mxu0 0.0
        %1032 = vmatpush1.msra.mxu0 0.0
        %1033 = vmatprep.subr.mxu0 0.0
        %1034 = vmatpush1.msra.mxu0 0.0
        %1035 = vmatprep.subr.mxu0 0.0
        %1036 = vmatpush1.msra.mxu0 0.0
        %1037 = vmatprep.mubr.f32.mxu0 0.0
        %1038 = vmatmul.mubr.f32.gmra.mrb[0].mxu0 %v971
        %v1039 = vpop.f32.mrb[0].mxu0
        %v1040 = vadd.f32 %v552, %v1039
        %v1041 = vpop.f32.mrb[0].mxu0
        %1042 = vdwg.mxu0
        %v1043 = vsel %vm524, %v1040, 0.0
        %1044 = vadd.xlane.f32.xlu0 %v1043
        %v1045 = vpop.xlane.xlu0 %1044
        %v1046 = vmul.f32 %v1045, %v528
        %v1047 = vsub.f32 %v1040, %v1046
        %v1048 = vmul.f32 %v1047, %v1047
        %v1049 = vsel %vm524, %v1048, 0.0
        %1050 = vadd.xlane.f32.xlu0 %v1049
        %v1051 = vpop.xlane.xlu0 %1050
        %v1052 = vmul.f32 %v1051, %v528
        %v1053 = vadd.f32 %v1052, 1e-05
        %v1054 = vrsqrt.pop %v1053
        %v1055 = vmul.f32 %v1047, %v1054
        %v1056 = vmul.f32 %v1055, %v543
        %v1057 = vadd.f32 %v1056, %v550
        %v1059 = vsel %vm524, %v1057, 0
        %1061 = vmatprep.subr.mxu0 0.0
        %1062 = vmatpush1.msra.mxu0 %v511
        %1063 = vmatprep.subr.mxu0 0.0
        %1064 = vmatpush1.msra.mxu0 %v512
        %1065 = vmatprep.subr.mxu0 0.0
        %1066 = vmatpush1.msra.mxu0 %v513
        %1067 = vmatprep.subr.mxu0 0.0
        %1068 = vmatpush1.msra.mxu0 %v514
        %1069 = vmatprep.subr.mxu0 0.0
        %1070 = vmatpush1.msra.mxu0 0.0
        %1071 = vmatprep.subr.mxu0 0.0
        %1072 = vmatpush1.msra.mxu0 0.0
        %1073 = vmatprep.subr.mxu0 0.0
        %1074 = vmatpush1.msra.mxu0 0.0
        %1075 = vmatprep.subr.mxu0 0.0
        %1076 = vmatpush1.msra.mxu0 0.0
        %1077 = vmatprep.subr.mxu0 0.0
        %1078 = vmatpush1.msra.mxu0 0.0
        %1079 = vmatprep.subr.mxu0 0.0
        %1080 = vmatpush1.msra.mxu0 0.0
        %1081 = vmatprep.subr.mxu0 0.0
        %1082 = vmatpush1.msra.mxu0 0.0
        %1083 = vmatprep.subr.mxu0 0.0
        %1084 = vmatpush1.msra.mxu0 0.0
        %1085 = vmatprep.subr.mxu0 0.0
        %1086 = vmatpush1.msra.mxu0 0.0
        %1087 = vmatprep.subr.mxu0 0.0
        %1088 = vmatpush1.msra.mxu0 0.0
        %1089 = vmatprep.subr.mxu0 0.0
        %1090 = vmatpush1.msra.mxu0 0.0
        %1091 = vmatprep.subr.mxu0 0.0
        %1092 = vmatpush1.msra.mxu0 0.0
        %1093 = vmatprep.subr.mxu0 0.0
        %1094 = vmatpush1.msra.mxu0 0.0
        %1095 = vmatprep.subr.mxu0 0.0
        %1096 = vmatpush1.msra.mxu0 0.0
        %1097 = vmatprep.subr.mxu0 0.0
        %1098 = vmatpush1.msra.mxu0 0.0
        %1099 = vmatprep.subr.mxu0 0.0
        %1100 = vmatpush1.msra.mxu0 0.0
        %1101 = vmatprep.subr.mxu0 0.0
        %1102 = vmatpush1.msra.mxu0 0.0
        %1103 = vmatprep.subr.mxu0 0.0
        %1104 = vmatpush1.msra.mxu0 0.0
        %1105 = vmatprep.subr.mxu0 0.0
        %1106 = vmatpush1.msra.mxu0 0.0
        %1107 = vmatprep.subr.mxu0 0.0
        %1108 = vmatpush1.msra.mxu0 0.0
        %1109 = vmatprep.subr.mxu0 0.0
        %1110 = vmatpush1.msra.mxu0 0.0
        %1111 = vmatprep.subr.mxu0 0.0
        %1112 = vmatpush1.msra.mxu0 0.0
        %1113 = vmatprep.subr.mxu0 0.0
        %1114 = vmatpush1.msra.mxu0 0.0
        %1115 = vmatprep.subr.mxu0 0.0
        %1116 = vmatpush1.msra.mxu0 0.0
        %1117 = vmatprep.subr.mxu0 0.0
        %1118 = vmatpush1.msra.mxu0 0.0
        %1119 = vmatprep.subr.mxu0 0.0
        %1120 = vmatpush1.msra.mxu0 0.0
        %1121 = vmatprep.subr.mxu0 0.0
        %1122 = vmatpush1.msra.mxu0 0.0
        %1123 = vmatprep.subr.mxu0 0.0
        %1124 = vmatpush1.msra.mxu0 0.0
        %1125 = vmatprep.mubr.f32.mxu0 0.0
        %1126 = vmatmul.mubr.f32.gmra.mrb[0].mxu0 %v1059
        %v1127 = vpop.f32.mrb[0].mxu0
        %v1128 = vadd.f32 0.0, %v1127
        %v1129 = vpop.f32.mrb[0].mxu0
        %1130 = vdwg.mxu0
        %v1131 = vmul.f32 %v1128, 0.5
        %v1132 = vmul.f32 %v1128, 0.70710677
        %v1133 = verf.f32.pop %v1132
        %v1134 = vadd.f32 %v1133, 1.0
        %v1135 = vmul.f32 %v1131, %v1134
        %1137 = vrot.lane.b32.xlu0 %v1128, 64
        %v1138 = vpop.permute.xlu0 %1137
        %v1140 = vmul.f32 %v1135, %v1138
        %1142 = vrot.lane.b32.xlu0 %v1140, 64
        %v1143 = vpop.permute.xlu0 %1142
        %vm1144 = vcmask 523264
        %v1145 = vsel %vm1144, %v1143, 0
        %1147 = vmatprep.subr.mxu0 0.0
        %1148 = vmatpush1.msra.mxu0 %v515
        %1149 = vmatprep.subr.mxu0 0.0
        %1150 = vmatpush1.msra.mxu0 %v516
        %1151 = vmatprep.subr.mxu0 0.0
        %1152 = vmatpush1.msra.mxu0 %v517
        %1153 = vmatprep.subr.mxu0 0.0
        %1154 = vmatpush1.msra.mxu0 %v518
        %1155 = vmatprep.subr.mxu0 0.0
        %1156 = vmatpush1.msra.mxu0 %v519
        %1157 = vmatprep.subr.mxu0 0.0
        %1158 = vmatpush1.msra.mxu0 %v520
        %1159 = vmatprep.subr.mxu0 0.0
        %1160 = vmatpush1.msra.mxu0 %v521
        %1161 = vmatprep.subr.mxu0 0.0
        %1162 = vmatpush1.msra.mxu0 %v522
        %1163 = vmatprep.subr.mxu0 0.0
        %1164 = vmatpush1.msra.mxu0 0.0
        %1165 = vmatprep.subr.mxu0 0.0
        %1166 = vmatpush1.msra.mxu0 0.0
        %1167 = vmatprep.subr.mxu0 0.0
        %1168 = vmatpush1.msra.mxu0 0.0
        %1169 = vmatprep.subr.mxu0 0.0
        %1170 = vmatpush1.msra.mxu0 0.0
        %1171 = vmatprep.subr.mxu0 0.0
        %1172 = vmatpush1.msra.mxu0 0.0
        %1173 = vmatprep.subr.mxu0 0.0
        %1174 = vmatpush1.msra.mxu0 0.0
        %1175 = vmatprep.subr.mxu0 0.0
        %1176 = vmatpush1.msra.mxu0 0.0
        %1177 = vmatprep.subr.mxu0 0.0
        %1178 = vmatpush1.msra.mxu0 0.0
        %1179 = vmatprep.subr.mxu0 0.0
        %1180 = vmatpush1.msra.mxu0 0.0
        %1181 = vmatprep.subr.mxu0 0.0
        %1182 = vmatpush1.msra.mxu0 0.0
        %1183 = vmatprep.subr.mxu0 0.0
        %1184 = vmatpush1.msra.mxu0 0.0
        %1185 = vmatprep.subr.mxu0 0.0
        %1186 = vmatpush1.msra.mxu0 0.0
        %1187 = vmatprep.subr.mxu0 0.0
        %1188 = vmatpush1.msra.mxu0 0.0
        %1189 = vmatprep.subr.mxu0 0.0
        %1190 = vmatpush1.msra.mxu0 0.0
        %1191 = vmatprep.subr.mxu0 0.0
        %1192 = vmatpush1.msra.mxu0 0.0
        %1193 = vmatprep.subr.mxu0 0.0
        %1194 = vmatpush1.msra.mxu0 0.0
        %1195 = vmatprep.subr.mxu0 0.0
        %1196 = vmatpush1.msra.mxu0 0.0
        %1197 = vmatprep.subr.mxu0 0.0
        %1198 = vmatpush1.msra.mxu0 0.0
        %1199 = vmatprep.subr.mxu0 0.0
        %1200 = vmatpush1.msra.mxu0 0.0
        %1201 = vmatprep.subr.mxu0 0.0
        %1202 = vmatpush1.msra.mxu0 0.0
        %1203 = vmatprep.subr.mxu0 0.0
        %1204 = vmatpush1.msra.mxu0 0.0
        %1205 = vmatprep.subr.mxu0 0.0
        %1206 = vmatpush1.msra.mxu0 0.0
        %1207 = vmatprep.subr.mxu0 0.0
        %1208 = vmatpush1.msra.mxu0 0.0
        %1209 = vmatprep.subr.mxu0 0.0
        %1210 = vmatpush1.msra.mxu0 0.0
        %1211 = vmatprep.mubr.f32.mxu0 0.0
        %1212 = vmatmul.mubr.f32.gmra.mrb[0].mxu0 %v1145
        %v1213 = vpop.f32.mrb[0].mxu0
        %v1214 = vadd.f32 %v1057, %v1213
        %v1215 = vpop.f32.mrb[0].mxu0
        %1216 = vdwg.mxu0
        %1217 = vst.msk [vmem:[%s468] sm:$0xff] %vm524, %v1214
        %s1218 = sand.u32 %s256, 1
        %s1219 = scalar_lea.sflag [#allocation4], %s1218
        %s1220 = sand.u32 %s256, 1
        %s1221 = smul.addr %s1220, 8
        %s1222 = scalar_lea.vmem [#allocation8], %s1221
        // Predicated region
        $region69: #{tpu_custom_call.1} parent=51 // pred_check
          %p1223 = pneg %p266
        $region70: #{tpu_custom_call.1} parent=51 // pred_check_branch
          %1225 = sbr.rel (%p1223) target = $region72
        $region71: #{tpu_custom_call.1} parent=51 // pred_region
          %s1227 = ssub.s32 128, 128
          %1228 = vsyncadd %s1219, %s1227
          %s1229 = smul.addr %s32, 128
          %s1230 = scalar_lea.hbm %s8, %s1229
          %s1232 = sshll.u32 %s1222, 4
          %s1233 = int_to_ptr.vmem [resolvable:$true] %s1232
          %1235 = dma.vmem_to_hbm [thread:$0]  %s1233, 128, %s1230, %s1219
        $region72: #{tpu_custom_call.1} parent=51 // pred_fallthru
          _
      $region52: #{tpu_custom_call.1} parent=5 // pred_fallthru
        _
      %p1236 = scmp.le.s32.totalorder 2, %s23
      // Predicated region
      $region73: #{tpu_custom_call.1} parent=5 // pred_check
        %p1237 = pneg %p1236
      $region74: #{tpu_custom_call.1} parent=5 // pred_check_branch
        %1239 = sbr.rel (%p1237) target = $region76
      $region75: #{tpu_custom_call.1} parent=5 // pred_region
        %s1240 = ssub.s32 %s23, 2
        // Predicated region
        $region77: #{tpu_custom_call.1} parent=75 // pred_check
          %p1241 = pneg %p272
        $region78: #{tpu_custom_call.1} parent=75 // pred_check_branch
          %1243 = sbr.rel (%p1241) target = $region80
        $region79: #{tpu_custom_call.1} parent=75 // pred_region
          %s1244 = sand.u32 %s257, 1
          %s1245 = scalar_lea.sflag [#allocation4], %s1244
          %s1246 = sand.u32 %s257, 1
          %s1247 = smul.addr %s1246, 8
          %s1248 = scalar_lea.vmem [#allocation8], %s1247
          %1249 = dma.done %s1245, 128
        $region80: #{tpu_custom_call.1} parent=75 // pred_fallthru
          _
      $region76: #{tpu_custom_call.1} parent=5 // pred_fallthru
        _
    $region6: #{tpu_custom_call.1} parent=1 // loop_footer
      %s27 = sadd.s32 1, %s23
    $region7: #{tpu_custom_call.1} parent=1 // loop_footer_branch
      %22 = sbr.rel target = $region3
    $region8: #{tpu_custom_call.1} parent=1 // loop_exit
      _
    %1250 = vsyncpa [#allocation3], 1
    %s1251 = scalar_lea.sflag [#allocation3], 1
    %1252 = vsyncpa %s1251, 1
    %1253 = vsyncpa [#allocation6], 1
    %s1254 = scalar_lea.sflag [#allocation6], 1
    %1255 = vsyncpa %s1254, 1
    %1256 = vsyncpa [#allocation4], 1
    %s1257 = scalar_lea.sflag [#allocation4], 1
    %1258 = vsyncpa %s1257, 1

</llo_original>
